<compile_context>
chip_gen: v7x
topology: tpu7x:2x2x1
jax: 0.10.0
libtpu: 0.0.40
codegen_flags: <defaults>
</compile_context>

<pallas_src>
import jax
import jax.numpy as jnp
from jax import lax
from jax.experimental import pallas as pl
from jax.experimental.pallas import tpu as pltpu

NUM_IN_CH = 3
NUM_OUT_CH = 3
NUM_FEAT = 16
NUM_CONV = 2
UPSCALE = 2

CIN_PAD = 8                               # input channels padded 3 -> 8 (sublane aligned)
CPS = NUM_OUT_CH * UPSCALE * UPSCALE      # 12: pre-pixel-shuffle output channels


# -----------------------------------------------------------------------------
# Parameters
# -----------------------------------------------------------------------------
def init_params(key):
    params = {"body_w": [], "body_b": [], "body_slope": []}
    cin = NUM_IN_CH
    for _ in range(NUM_CONV + 1):  # first conv + NUM_CONV body convs, each followed by PReLU
        key, kw, kb = jax.random.split(key, 3)
        params["body_w"].append(
            jax.random.normal(kw, (3, 3, cin, NUM_FEAT), jnp.float32) * 0.05)
        params["body_b"].append(
            jax.random.normal(kb, (NUM_FEAT,), jnp.float32) * 0.05)
        # PyTorch PReLU default init: constant 0.25 per channel.
        params["body_slope"].append(jnp.full((NUM_FEAT,), 0.25, jnp.float32))
        cin = NUM_FEAT
    key, kw, kb = jax.random.split(key, 3)
    params["last_w"] = jax.random.normal(kw, (3, 3, NUM_FEAT, CPS), jnp.float32) * 0.05
    params["last_b"] = jax.random.normal(kb, (CPS,), jnp.float32) * 0.05
    return params


def _pack_params(params):
    """Transposed bf16 weights for the lane-dense kernel.

    Returns:
      w0 (NUM_FEAT, 9*CIN_PAD)              bf16  first conv (K = 72)
      wb (NUM_CONV, NUM_FEAT, 9*NUM_FEAT)   bf16  body convs (K = 144)
      wl (CPS, 9*NUM_FEAT + CIN_PAD)        bf16  last conv + residual selection (K = 152)
      b  (NUM_FEAT, NUM_CONV + 2)           f32   biases, column l = layer l (last padded)
      s  (NUM_FEAT, NUM_CONV + 1)           f32   PReLU slopes, column l = layer l
    K-axis layout is tap-major: k = (dh*3 + dw)*Cin + cin.
    """
    F = NUM_FEAT
    r2 = UPSCALE * UPSCALE

    w0 = params["body_w"][0]                                         # (3,3,3,F)
    w0 = jnp.pad(w0, ((0, 0), (0, 0), (0, CIN_PAD - NUM_IN_CH), (0, 0)))
    w0 = jnp.transpose(w0, (3, 0, 1, 2)).reshape(F, 9 * CIN_PAD)

    wb = jnp.stack([jnp.transpose(w, (3, 0, 1, 2)).reshape(F, 9 * F)
                    for w in params["body_w"][1:]])                  # (NUM_CONV, F, 9F)

    wl = jnp.transpose(params["last_w"], (3, 0, 1, 2)).reshape(CPS, 9 * F)
    # 0/1 selection block: output channel c*r^2+k receives input channel c (nearest-neighbour
    # residual, folded into the matmul as CIN_PAD extra K rows).
    sel = jnp.zeros((CPS, CIN_PAD), jnp.float32)
    for c in range(NUM_OUT_CH):
        sel = sel.at[c * r2:(c + 1) * r2, c].set(1.0)
    wl = jnp.concatenate([wl, sel], axis=1)                          # (CPS, 9F + CIN_PAD)

    b_cols = list(params["body_b"]) + [jnp.pad(params["last_b"], (0, F - CPS))]
    b = jnp.stack(b_cols, axis=1).astype(jnp.float32)                # (F, L)
    s = jnp.stack(params["body_slope"], axis=1).astype(jnp.float32)  # (F, L-1)
    return (w0.astype(jnp.bfloat16), wb.astype(jnp.bfloat16),
            wl.astype(jnp.bfloat16), b, s)


# -----------------------------------------------------------------------------
# Fused Pallas forward
# -----------------------------------------------------------------------------
def forward(x_nchw, params):
    """Matches SRVGGNetCompact.forward (act_type='prelu', enhancement_type='none')."""
    w0, wb, wl, b_all, s_all = _pack_params(params)
    r, co = UPSCALE, NUM_OUT_CH
    F = NUM_FEAT
    L = NUM_CONV + 2

    x = x_nchw.astype(jnp.float32)
    N, Cin, H, W = x.shape
    WP = W + 2                      # padded width (1 left + 1 right)
    M = H * WP                      # flattened conv-output lanes per image (incl. 2 wrap cols/row)
    NPAD = (H + 3) * WP             # padded plane: 1 top + 2 bottom rows (flat-shift slack)

    # Invariants of the flattened-shift scheme (mask modulus, store offset, slack move together).
    assert NPAD == (WP + 1) + M + (2 * WP - 1)       # front halo + interior + back halo
    assert (M - 1) + 2 * WP + 2 <= NPAD - 1          # deepest tap read stays in bounds

    # Channel-padded (3->8), spatially padded, channels-first, flattened, bf16 input.
    xp = jnp.pad(x.astype(jnp.bfloat16),
                 ((0, 0), (0, CIN_PAD - Cin), (1, 2), (1, 1))).reshape(N, CIN_PAD, NPAD)

    K0 = 9 * CIN_PAD
    KB = 9 * F
    KL = 9 * F + CIN_PAD

    def kernel(xp_ref, w0_ref, wb_ref, wl_ref, b_ref, s_ref, out_ref, buf_a, buf_b):
        front = WP + 1
        back = 2 * WP - 1
        # Zero only the halo strips of the ping-pong buffers; the interior is fully
        # overwritten by every shifted store (wrap columns re-zeroed via the mask).
        for buf in (buf_a, buf_b):
            buf[:, 0:front] = jnp.zeros((F, front), jnp.bfloat16)
            buf[:, front + M:NPAD] = jnp.zeros((F, back), jnp.bfloat16)

        # Wrap-column validity mask over lanes: m is a real pixel iff (m mod WP) < W.
        # Column index computed without vector int div/mod: float quotient + exact correction.
        lane = lax.broadcasted_iota(jnp.int32, (1, M), 1)
        row_f = jnp.floor(lane.astype(jnp.float32) * (1.0 / WP))
        col = lane - row_f.astype(jnp.int32) * WP
        col = jnp.where(col < 0, col + WP, jnp.where(col >= WP, col - WP, col))
        valid = col < W                                              # (1, M) bool

        def im2col(read_tap):
            return jnp.concatenate(
                [read_tap(dh * WP + dw) for dh in range(3) for dw in range(3)], axis=0)

        def act_store(y, layer, dst):
            y = y + b_ref[:, layer:layer + 1]                        # (F,1) bias over lanes
            y = jnp.where(y >= 0.0, y, y * s_ref[:, layer:layer + 1])  # per-channel PReLU
            y = jnp.where(valid, y, 0.0)                             # keep next layer's halo
            dst[:, front:front + M] = y.astype(jnp.bfloat16)         # shifted interior store

        # --- first conv: taps read straight from the input ref (K = 72) ---
        p = im2col(lambda off: xp_ref[0, :, off:off + M])            # (9*CIN_PAD, M) bf16
        y = jnp.dot(w0_ref[...], p, preferred_element_type=jnp.float32)
        act_store(y, 0, buf_a)

        # --- body convs (K = 144), ping-pong in VMEM ---
        bufs = (buf_a, buf_b)
        cur = 0
        for l in range(NUM_CONV):
            src, dst = bufs[cur], bufs[1 - cur]
            p = im2col(lambda off: src[:, off:off + M])              # (9F, M) bf16
            y = jnp.dot(wb_ref[l], p, preferred_element_type=jnp.float32)
            act_store(y, l + 1, dst)
            cur = 1 - cur

        # --- last conv with the nearest-neighbour residual folded in as extra K rows ---
        src = bufs[cur]
        p = jnp.concatenate(
            [src[:, dh * WP + dw:dh * WP + dw + M] for dh in range(3) for dw in range(3)]
            + [xp_ref[0, :, front:front + M]], axis=0)               # (9F + CIN_PAD, M) bf16
        y = jnp.dot(wl_ref[...], p, preferred_element_type=jnp.float32)   # (CPS, M) f32
        y = y + b_ref[0:CPS, L - 1:L]
        out_ref[0, :, :] = y.astype(out_ref.dtype)

    out = pl.pallas_call(
        kernel,
        out_shape=jax.ShapeDtypeStruct((N, CPS, M), jnp.float32),
        grid_spec=pltpu.PrefetchScalarGridSpec(
            num_scalar_prefetch=0,
            grid=(N,),
            in_specs=[
                pl.BlockSpec((1, CIN_PAD, NPAD), lambda n: (n, 0, 0)),  # padded-flat input (bf16)
                pl.BlockSpec((F, K0), lambda n: (0, 0)),                # first-conv weight
                pl.BlockSpec((NUM_CONV, F, KB), lambda n: (0, 0, 0)),   # body-conv weights
                pl.BlockSpec((CPS, KL), lambda n: (0, 0)),              # last-conv weight + residual
                pl.BlockSpec((F, L), lambda n: (0, 0)),                 # per-layer bias columns
                pl.BlockSpec((F, L - 1), lambda n: (0, 0)),             # per-layer PReLU slopes
            ],
            out_specs=pl.BlockSpec((1, CPS, M), lambda n: (n, 0, 0)),   # lane-dense output
            scratch_shapes=[
                pltpu.VMEM((F, NPAD), jnp.bfloat16),   # ping
                pltpu.VMEM((F, NPAD), jnp.bfloat16),   # pong
            ],
        ),
        compiler_params=pltpu.CompilerParams(
            dimension_semantics=("parallel",)),
    )(xp, w0, wb, wl, b_all, s_all)

    # Strip the 2 wrap columns, pixel-shuffle (pure layout glue); stays NCHW throughout.
    y = out.reshape(N, CPS, H, WP)[:, :, :, :W]
    y = y.reshape(N, co, r, r, H, W)
    y = jnp.transpose(y, (0, 1, 4, 2, 5, 3)).reshape(N, co, H * r, W * r)
    return y


# -----------------------------------------------------------------------------
# Pure-JAX reference (mirrors the kernel numerics: bf16 operands, f32 accumulation)
# -----------------------------------------------------------------------------
def pixel_shuffle_nhwc(x, r, c_out):
    N, H, W, _ = x.shape
    x = x.reshape(N, H, W, c_out, r, r)
    x = jnp.transpose(x, (0, 1, 4, 2, 5, 3))
    return x.reshape(N, H * r, W * r, c_out)


def _conv_ref(x, w, b):
    y = lax.conv_general_dilated(
        x.astype(jnp.bfloat16), w.astype(jnp.bfloat16),
        window_strides=(1, 1), padding="SAME",
        dimension_numbers=("NHWC", "HWIO", "NHWC"),
        preferred_element_type=jnp.float32)
    return y + b


def forward_ref(x_nchw, params):
    x = jnp.transpose(x_nchw, (0, 2, 3, 1)).astype(jnp.float32)
    out = x
    for w, b, s in zip(params["body_w"], params["body_b"], params["body_slope"]):
        out = _conv_ref(out, w, b)
        out = jnp.where(out >= 0.0, out, out * s)
    out = _conv_ref(out, params["last_w"], params["last_b"])
    out = pixel_shuffle_nhwc(out, UPSCALE, NUM_OUT_CH)
    base = jnp.repeat(jnp.repeat(x, UPSCALE, axis=1), UPSCALE, axis=2)
    return jnp.transpose(out + base, (0, 3, 1, 2))


if __name__ == "__main__":
    key = jax.random.PRNGKey(0)
    kp, kx = jax.random.split(key)
    params = init_params(kp)
    x = jax.random.uniform(kx, (2, NUM_IN_CH, 16, 16), jnp.float32)

    out = jax.block_until_ready(forward(x, params))
    expected_shape = (2, NUM_OUT_CH, 16 * UPSCALE, 16 * UPSCALE)
    assert out.shape == expected_shape, (out.shape, expected_shape)

    ref = jax.block_until_ready(forward_ref(x, params))
    max_err = float(jnp.max(jnp.abs(out - ref)))
    assert jnp.allclose(out, ref, rtol=2e-2, atol=2e-2), max_err

    print("KERNEL_OK")
</pallas_src>

<mosaic_0001>
module attributes {stable_mosaic.version = 11 : i64} {
  func.func @kernel(%arg0: i32, %arg1: memref<1x8x342xbf16, #tpu.memory_space<vmem>>, %arg2: memref<16x72xbf16, #tpu.memory_space<vmem>>, %arg3: memref<2x16x144xbf16, #tpu.memory_space<vmem>>, %arg4: memref<12x152xbf16, #tpu.memory_space<vmem>>, %arg5: memref<16x4xf32, #tpu.memory_space<vmem>>, %arg6: memref<16x3xf32, #tpu.memory_space<vmem>>, %arg7: memref<1x12x288xf32, #tpu.memory_space<vmem>>, %arg8: memref<16x342xbf16, #tpu.memory_space<vmem>>, %arg9: memref<16x342xbf16, #tpu.memory_space<vmem>>) attributes {dimension_semantics = [#tpu.dimension_semantics<parallel>], iteration_bounds = array<i64: 2>, scalar_prefetch = 0 : i64, scratch_operands = 2 : i64, tpu.core_type = #tpu.core_type<tc>, window_params = [{transform_indices = @transform_0, window_bounds = array<i64: 1, 8, 342>}, {pipeline_mode = #tpu.pipeline_mode<synchronous>, transform_indices = @transform_1, window_bounds = array<i64: 16, 72>}, {pipeline_mode = #tpu.pipeline_mode<synchronous>, transform_indices = @transform_2, window_bounds = array<i64: 2, 16, 144>}, {pipeline_mode = #tpu.pipeline_mode<synchronous>, transform_indices = @transform_3, window_bounds = array<i64: 12, 152>}, {pipeline_mode = #tpu.pipeline_mode<synchronous>, transform_indices = @transform_4, window_bounds = array<i64: 16, 4>}, {pipeline_mode = #tpu.pipeline_mode<synchronous>, transform_indices = @transform_5, window_bounds = array<i64: 16, 3>}, {transform_indices = @transform_6, window_bounds = array<i64: 1, 12, 288>}]} {
    %cst = arith.constant 0.000000e+00 : bf16
    %0 = vector.broadcast %cst : bf16 to vector<16x19xbf16>
    %c0 = arith.constant 0 : index
    %c0_0 = arith.constant 0 : index
    %1 = vector.load %arg8[%c0, %c0_0] : memref<16x342xbf16, #tpu.memory_space<vmem>>, vector<16x19xbf16>
    tpu.vector_store %arg8[%c0, %c0_0], %0 {strides = array<i32>} : memref<16x342xbf16, #tpu.memory_space<vmem>>, vector<16x19xbf16>,
    %cst_1 = arith.constant 0.000000e+00 : bf16
    %2 = vector.broadcast %cst_1 : bf16 to vector<16x35xbf16>
    %c0_2 = arith.constant 0 : index
    %c307 = arith.constant 307 : index
    %3 = vector.load %arg8[%c0_2, %c307] : memref<16x342xbf16, #tpu.memory_space<vmem>>, vector<16x35xbf16>
    tpu.vector_store %arg8[%c0_2, %c307], %2 {strides = array<i32>} : memref<16x342xbf16, #tpu.memory_space<vmem>>, vector<16x35xbf16>,
    %cst_3 = arith.constant 0.000000e+00 : bf16
    %4 = vector.broadcast %cst_3 : bf16 to vector<16x19xbf16>
    %c0_4 = arith.constant 0 : index
    %c0_5 = arith.constant 0 : index
    %5 = vector.load %arg9[%c0_4, %c0_5] : memref<16x342xbf16, #tpu.memory_space<vmem>>, vector<16x19xbf16>
    tpu.vector_store %arg9[%c0_4, %c0_5], %4 {strides = array<i32>} : memref<16x342xbf16, #tpu.memory_space<vmem>>, vector<16x19xbf16>,
    %cst_6 = arith.constant 0.000000e+00 : bf16
    %6 = vector.broadcast %cst_6 : bf16 to vector<16x35xbf16>
    %c0_7 = arith.constant 0 : index
    %c307_8 = arith.constant 307 : index
    %7 = vector.load %arg9[%c0_7, %c307_8] : memref<16x342xbf16, #tpu.memory_space<vmem>>, vector<16x35xbf16>
    tpu.vector_store %arg9[%c0_7, %c307_8], %6 {strides = array<i32>} : memref<16x342xbf16, #tpu.memory_space<vmem>>, vector<16x35xbf16>,
    %8 = tpu.iota {dimensions = array<i32: 1>} : vector<1x288xi32>
    %9 = arith.sitofp %8 : vector<1x288xi32> to vector<1x288xf32>
    %cst_9 = arith.constant 0.055555556 : f32
    %10 = vector.broadcast %cst_9 : f32 to vector<1x288xf32>
    %11 = arith.mulf %9, %10 : vector<1x288xf32>
    %12 = math.floor %11 : vector<1x288xf32>
    %13 = arith.fptosi %12 : vector<1x288xf32> to vector<1x288xi32>
    %c18_i32 = arith.constant 18 : i32
    %14 = vector.broadcast %c18_i32 : i32 to vector<1x288xi32>
    %15 = arith.muli %13, %14 : vector<1x288xi32>
    %16 = arith.subi %8, %15 : vector<1x288xi32>
    %c0_i32 = arith.constant 0 : i32
    %17 = vector.broadcast %c0_i32 : i32 to vector<1x288xi32>
    %18 = arith.cmpi slt, %16, %17 : vector<1x288xi32>
    %c18_i32_10 = arith.constant 18 : i32
    %19 = vector.broadcast %c18_i32_10 : i32 to vector<1x288xi32>
    %20 = arith.addi %16, %19 : vector<1x288xi32>
    %c18_i32_11 = arith.constant 18 : i32
    %21 = vector.broadcast %c18_i32_11 : i32 to vector<1x288xi32>
    %22 = arith.cmpi sge, %16, %21 : vector<1x288xi32>
    %c18_i32_12 = arith.constant 18 : i32
    %23 = vector.broadcast %c18_i32_12 : i32 to vector<1x288xi32>
    %24 = arith.subi %16, %23 : vector<1x288xi32>
    %25 = arith.select %22, %24, %16 : vector<1x288xi1>, vector<1x288xi32>
    %26 = arith.select %18, %20, %25 : vector<1x288xi1>, vector<1x288xi32>
    %c16_i32 = arith.constant 16 : i32
    %27 = vector.broadcast %c16_i32 : i32 to vector<1x288xi32>
    %28 = arith.cmpi slt, %26, %27 : vector<1x288xi32>
    %c0_13 = arith.constant 0 : index
    %c0_14 = arith.constant 0 : index
    %c0_15 = arith.constant 0 : index
    %29 = vector.load %arg1[%c0_13, %c0_14, %c0_15] : memref<1x8x342xbf16, #tpu.memory_space<vmem>>, vector<1x8x288xbf16>
    %30 = vector.shape_cast %29 : vector<1x8x288xbf16> to vector<8x288xbf16>
    %c0_16 = arith.constant 0 : index
    %c0_17 = arith.constant 0 : index
    %c1 = arith.constant 1 : index
    %31 = vector.load %arg1[%c0_16, %c0_17, %c1] : memref<1x8x342xbf16, #tpu.memory_space<vmem>>, vector<1x8x288xbf16>
    %32 = vector.shape_cast %31 : vector<1x8x288xbf16> to vector<8x288xbf16>
    %c0_18 = arith.constant 0 : index
    %c0_19 = arith.constant 0 : index
    %c2 = arith.constant 2 : index
    %33 = vector.load %arg1[%c0_18, %c0_19, %c2] : memref<1x8x342xbf16, #tpu.memory_space<vmem>>, vector<1x8x288xbf16>
    %34 = vector.shape_cast %33 : vector<1x8x288xbf16> to vector<8x288xbf16>
    %c0_20 = arith.constant 0 : index
    %c0_21 = arith.constant 0 : index
    %c18 = arith.constant 18 : index
    %35 = vector.load %arg1[%c0_20, %c0_21, %c18] : memref<1x8x342xbf16, #tpu.memory_space<vmem>>, vector<1x8x288xbf16>
    %36 = vector.shape_cast %35 : vector<1x8x288xbf16> to vector<8x288xbf16>
    %c0_22 = arith.constant 0 : index
    %c0_23 = arith.constant 0 : index
    %c19 = arith.constant 19 : index
    %37 = vector.load %arg1[%c0_22, %c0_23, %c19] : memref<1x8x342xbf16, #tpu.memory_space<vmem>>, vector<1x8x288xbf16>
    %38 = vector.shape_cast %37 : vector<1x8x288xbf16> to vector<8x288xbf16>
    %c0_24 = arith.constant 0 : index
    %c0_25 = arith.constant 0 : index
    %c20 = arith.constant 20 : index
    %39 = vector.load %arg1[%c0_24, %c0_25, %c20] : memref<1x8x342xbf16, #tpu.memory_space<vmem>>, vector<1x8x288xbf16>
    %40 = vector.shape_cast %39 : vector<1x8x288xbf16> to vector<8x288xbf16>
    %c0_26 = arith.constant 0 : index
    %c0_27 = arith.constant 0 : index
    %c36 = arith.constant 36 : index
    %41 = vector.load %arg1[%c0_26, %c0_27, %c36] : memref<1x8x342xbf16, #tpu.memory_space<vmem>>, vector<1x8x288xbf16>
    %42 = vector.shape_cast %41 : vector<1x8x288xbf16> to vector<8x288xbf16>
    %c0_28 = arith.constant 0 : index
    %c0_29 = arith.constant 0 : index
    %c37 = arith.constant 37 : index
    %43 = vector.load %arg1[%c0_28, %c0_29, %c37] : memref<1x8x342xbf16, #tpu.memory_space<vmem>>, vector<1x8x288xbf16>
    %44 = vector.shape_cast %43 : vector<1x8x288xbf16> to vector<8x288xbf16>
    %c0_30 = arith.constant 0 : index
    %c0_31 = arith.constant 0 : index
    %c38 = arith.constant 38 : index
    %45 = vector.load %arg1[%c0_30, %c0_31, %c38] : memref<1x8x342xbf16, #tpu.memory_space<vmem>>, vector<1x8x288xbf16>
    %46 = vector.shape_cast %45 : vector<1x8x288xbf16> to vector<8x288xbf16>
    %47 = tpu.concatenate %30, %32, %34, %36, %38, %40, %42, %44, %46 in 0 : vector<8x288xbf16>, vector<8x288xbf16>, vector<8x288xbf16>, vector<8x288xbf16>, vector<8x288xbf16>, vector<8x288xbf16>, vector<8x288xbf16>, vector<8x288xbf16>, vector<8x288xbf16> -> vector<72x288xbf16>
    %c0_32 = arith.constant 0 : index
    %c0_33 = arith.constant 0 : index
    %48 = vector.load %arg2[%c0_32, %c0_33] : memref<16x72xbf16, #tpu.memory_space<vmem>>, vector<16x72xbf16>
    %cst_34 = arith.constant dense<0.000000e+00> : vector<16x288xf32>
    %49 = tpu.matmul %48, %47, %cst_34 {dimension_numbers = #tpu.dot_dimension_numbers<[1], [0], [0], [1], [0, 0, 1, 1], [], []>} : vector<16x72xbf16>, vector<72x288xbf16>, vector<16x288xf32> -> vector<16x288xf32>
    %c0_35 = arith.constant 0 : index
    %c0_36 = arith.constant 0 : index
    %50 = vector.load %arg5[%c0_35, %c0_36] : memref<16x4xf32, #tpu.memory_space<vmem>>, vector<16x1xf32>
    %51 = vector.broadcast %50 : vector<16x1xf32> to vector<16x288xf32>
    %52 = arith.addf %49, %51 : vector<16x288xf32>
    %cst_37 = arith.constant 0.000000e+00 : f32
    %53 = vector.broadcast %cst_37 : f32 to vector<16x288xf32>
    %54 = arith.cmpf oge, %52, %53 : vector<16x288xf32>
    %c0_38 = arith.constant 0 : index
    %c0_39 = arith.constant 0 : index
    %55 = vector.load %arg6[%c0_38, %c0_39] : memref<16x3xf32, #tpu.memory_space<vmem>>, vector<16x1xf32>
    %56 = vector.broadcast %55 : vector<16x1xf32> to vector<16x288xf32>
    %57 = arith.mulf %52, %56 : vector<16x288xf32>
    %58 = arith.select %54, %52, %57 : vector<16x288xi1>, vector<16x288xf32>
    %cst_40 = arith.constant 0.000000e+00 : f32
    %59 = vector.shape_cast %28 : vector<1x288xi1> to vector<1x288xi1>
    %60 = vector.broadcast %59 : vector<1x288xi1> to vector<16x288xi1>
    %61 = vector.broadcast %cst_40 : f32 to vector<16x288xf32>
    %62 = arith.select %60, %58, %61 : vector<16x288xi1>, vector<16x288xf32>
    %63 = arith.truncf %62 : vector<16x288xf32> to vector<16x288xbf16>
    %c0_41 = arith.constant 0 : index
    %c19_42 = arith.constant 19 : index
    %64 = vector.load %arg8[%c0_41, %c19_42] : memref<16x342xbf16, #tpu.memory_space<vmem>>, vector<16x288xbf16>
    tpu.vector_store %arg8[%c0_41, %c19_42], %63 {strides = array<i32>} : memref<16x342xbf16, #tpu.memory_space<vmem>>, vector<16x288xbf16>,
    %c0_43 = arith.constant 0 : index
    %c0_44 = arith.constant 0 : index
    %65 = vector.load %arg8[%c0_43, %c0_44] : memref<16x342xbf16, #tpu.memory_space<vmem>>, vector<16x288xbf16>
    %c0_45 = arith.constant 0 : index
    %c1_46 = arith.constant 1 : index
    %66 = vector.load %arg8[%c0_45, %c1_46] : memref<16x342xbf16, #tpu.memory_space<vmem>>, vector<16x288xbf16>
    %c0_47 = arith.constant 0 : index
    %c2_48 = arith.constant 2 : index
    %67 = vector.load %arg8[%c0_47, %c2_48] : memref<16x342xbf16, #tpu.memory_space<vmem>>, vector<16x288xbf16>
    %c0_49 = arith.constant 0 : index
    %c18_50 = arith.constant 18 : index
    %68 = vector.load %arg8[%c0_49, %c18_50] : memref<16x342xbf16, #tpu.memory_space<vmem>>, vector<16x288xbf16>
    %c0_51 = arith.constant 0 : index
    %c19_52 = arith.constant 19 : index
    %69 = vector.load %arg8[%c0_51, %c19_52] : memref<16x342xbf16, #tpu.memory_space<vmem>>, vector<16x288xbf16>
    %c0_53 = arith.constant 0 : index
    %c20_54 = arith.constant 20 : index
    %70 = vector.load %arg8[%c0_53, %c20_54] : memref<16x342xbf16, #tpu.memory_space<vmem>>, vector<16x288xbf16>
    %c0_55 = arith.constant 0 : index
    %c36_56 = arith.constant 36 : index
    %71 = vector.load %arg8[%c0_55, %c36_56] : memref<16x342xbf16, #tpu.memory_space<vmem>>, vector<16x288xbf16>
    %c0_57 = arith.constant 0 : index
    %c37_58 = arith.constant 37 : index
    %72 = vector.load %arg8[%c0_57, %c37_58] : memref<16x342xbf16, #tpu.memory_space<vmem>>, vector<16x288xbf16>
    %c0_59 = arith.constant 0 : index
    %c38_60 = arith.constant 38 : index
    %73 = vector.load %arg8[%c0_59, %c38_60] : memref<16x342xbf16, #tpu.memory_space<vmem>>, vector<16x288xbf16>
    %74 = tpu.concatenate %65, %66, %67, %68, %69, %70, %71, %72, %73 in 0 : vector<16x288xbf16>, vector<16x288xbf16>, vector<16x288xbf16>, vector<16x288xbf16>, vector<16x288xbf16>, vector<16x288xbf16>, vector<16x288xbf16>, vector<16x288xbf16>, vector<16x288xbf16> -> vector<144x288xbf16>
    %c0_61 = arith.constant 0 : index
    %c0_62 = arith.constant 0 : index
    %c0_63 = arith.constant 0 : index
    %75 = vector.load %arg3[%c0_61, %c0_62, %c0_63] : memref<2x16x144xbf16, #tpu.memory_space<vmem>>, vector<1x16x144xbf16>
    %76 = vector.shape_cast %75 : vector<1x16x144xbf16> to vector<16x144xbf16>
    %cst_64 = arith.constant dense<0.000000e+00> : vector<16x288xf32>
    %77 = tpu.matmul %76, %74, %cst_64 {dimension_numbers = #tpu.dot_dimension_numbers<[1], [0], [0], [1], [0, 0, 1, 1], [], []>} : vector<16x144xbf16>, vector<144x288xbf16>, vector<16x288xf32> -> vector<16x288xf32>
    %c0_65 = arith.constant 0 : index
    %c1_66 = arith.constant 1 : index
    %78 = vector.load %arg5[%c0_65, %c1_66] : memref<16x4xf32, #tpu.memory_space<vmem>>, vector<16x1xf32>
    %79 = vector.broadcast %78 : vector<16x1xf32> to vector<16x288xf32>
    %80 = arith.addf %77, %79 : vector<16x288xf32>
    %cst_67 = arith.constant 0.000000e+00 : f32
    %81 = vector.broadcast %cst_67 : f32 to vector<16x288xf32>
    %82 = arith.cmpf oge, %80, %81 : vector<16x288xf32>
    %c0_68 = arith.constant 0 : index
    %c1_69 = arith.constant 1 : index
    %83 = vector.load %arg6[%c0_68, %c1_69] : memref<16x3xf32, #tpu.memory_space<vmem>>, vector<16x1xf32>
    %84 = vector.broadcast %83 : vector<16x1xf32> to vector<16x288xf32>
    %85 = arith.mulf %80, %84 : vector<16x288xf32>
    %86 = arith.select %82, %80, %85 : vector<16x288xi1>, vector<16x288xf32>
    %cst_70 = arith.constant 0.000000e+00 : f32
    %87 = vector.shape_cast %28 : vector<1x288xi1> to vector<1x288xi1>
    %88 = vector.broadcast %87 : vector<1x288xi1> to vector<16x288xi1>
    %89 = vector.broadcast %cst_70 : f32 to vector<16x288xf32>
    %90 = arith.select %88, %86, %89 : vector<16x288xi1>, vector<16x288xf32>
    %91 = arith.truncf %90 : vector<16x288xf32> to vector<16x288xbf16>
    %c0_71 = arith.constant 0 : index
    %c19_72 = arith.constant 19 : index
    %92 = vector.load %arg9[%c0_71, %c19_72] : memref<16x342xbf16, #tpu.memory_space<vmem>>, vector<16x288xbf16>
    tpu.vector_store %arg9[%c0_71, %c19_72], %91 {strides = array<i32>} : memref<16x342xbf16, #tpu.memory_space<vmem>>, vector<16x288xbf16>,
    %c0_73 = arith.constant 0 : index
    %c0_74 = arith.constant 0 : index
    %93 = vector.load %arg9[%c0_73, %c0_74] : memref<16x342xbf16, #tpu.memory_space<vmem>>, vector<16x288xbf16>
    %c0_75 = arith.constant 0 : index
    %c1_76 = arith.constant 1 : index
    %94 = vector.load %arg9[%c0_75, %c1_76] : memref<16x342xbf16, #tpu.memory_space<vmem>>, vector<16x288xbf16>
    %c0_77 = arith.constant 0 : index
    %c2_78 = arith.constant 2 : index
    %95 = vector.load %arg9[%c0_77, %c2_78] : memref<16x342xbf16, #tpu.memory_space<vmem>>, vector<16x288xbf16>
    %c0_79 = arith.constant 0 : index
    %c18_80 = arith.constant 18 : index
    %96 = vector.load %arg9[%c0_79, %c18_80] : memref<16x342xbf16, #tpu.memory_space<vmem>>, vector<16x288xbf16>
    %c0_81 = arith.constant 0 : index
    %c19_82 = arith.constant 19 : index
    %97 = vector.load %arg9[%c0_81, %c19_82] : memref<16x342xbf16, #tpu.memory_space<vmem>>, vector<16x288xbf16>
    %c0_83 = arith.constant 0 : index
    %c20_84 = arith.constant 20 : index
    %98 = vector.load %arg9[%c0_83, %c20_84] : memref<16x342xbf16, #tpu.memory_space<vmem>>, vector<16x288xbf16>
    %c0_85 = arith.constant 0 : index
    %c36_86 = arith.constant 36 : index
    %99 = vector.load %arg9[%c0_85, %c36_86] : memref<16x342xbf16, #tpu.memory_space<vmem>>, vector<16x288xbf16>
    %c0_87 = arith.constant 0 : index
    %c37_88 = arith.constant 37 : index
    %100 = vector.load %arg9[%c0_87, %c37_88] : memref<16x342xbf16, #tpu.memory_space<vmem>>, vector<16x288xbf16>
    %c0_89 = arith.constant 0 : index
    %c38_90 = arith.constant 38 : index
    %101 = vector.load %arg9[%c0_89, %c38_90] : memref<16x342xbf16, #tpu.memory_space<vmem>>, vector<16x288xbf16>
    %102 = tpu.concatenate %93, %94, %95, %96, %97, %98, %99, %100, %101 in 0 : vector<16x288xbf16>, vector<16x288xbf16>, vector<16x288xbf16>, vector<16x288xbf16>, vector<16x288xbf16>, vector<16x288xbf16>, vector<16x288xbf16>, vector<16x288xbf16>, vector<16x288xbf16> -> vector<144x288xbf16>
    %c1_91 = arith.constant 1 : index
    %c0_92 = arith.constant 0 : index
    %c0_93 = arith.constant 0 : index
    %103 = vector.load %arg3[%c1_91, %c0_92, %c0_93] : memref<2x16x144xbf16, #tpu.memory_space<vmem>>, vector<1x16x144xbf16>
    %104 = vector.shape_cast %103 : vector<1x16x144xbf16> to vector<16x144xbf16>
    %cst_94 = arith.constant dense<0.000000e+00> : vector<16x288xf32>
    %105 = tpu.matmul %104, %102, %cst_94 {dimension_numbers = #tpu.dot_dimension_numbers<[1], [0], [0], [1], [0, 0, 1, 1], [], []>} : vector<16x144xbf16>, vector<144x288xbf16>, vector<16x288xf32> -> vector<16x288xf32>
    %c0_95 = arith.constant 0 : index
    %c2_96 = arith.constant 2 : index
    %106 = vector.load %arg5[%c0_95, %c2_96] : memref<16x4xf32, #tpu.memory_space<vmem>>, vector<16x1xf32>
    %107 = vector.broadcast %106 : vector<16x1xf32> to vector<16x288xf32>
    %108 = arith.addf %105, %107 : vector<16x288xf32>
    %cst_97 = arith.constant 0.000000e+00 : f32
    %109 = vector.broadcast %cst_97 : f32 to vector<16x288xf32>
    %110 = arith.cmpf oge, %108, %109 : vector<16x288xf32>
    %c0_98 = arith.constant 0 : index
    %c2_99 = arith.constant 2 : index
    %111 = vector.load %arg6[%c0_98, %c2_99] : memref<16x3xf32, #tpu.memory_space<vmem>>, vector<16x1xf32>
    %112 = vector.broadcast %111 : vector<16x1xf32> to vector<16x288xf32>
    %113 = arith.mulf %108, %112 : vector<16x288xf32>
    %114 = arith.select %110, %108, %113 : vector<16x288xi1>, vector<16x288xf32>
    %cst_100 = arith.constant 0.000000e+00 : f32
    %115 = vector.shape_cast %28 : vector<1x288xi1> to vector<1x288xi1>
    %116 = vector.broadcast %115 : vector<1x288xi1> to vector<16x288xi1>
    %117 = vector.broadcast %cst_100 : f32 to vector<16x288xf32>
    %118 = arith.select %116, %114, %117 : vector<16x288xi1>, vector<16x288xf32>
    %119 = arith.truncf %118 : vector<16x288xf32> to vector<16x288xbf16>
    %c0_101 = arith.constant 0 : index
    %c19_102 = arith.constant 19 : index
    %120 = vector.load %arg8[%c0_101, %c19_102] : memref<16x342xbf16, #tpu.memory_space<vmem>>, vector<16x288xbf16>
    tpu.vector_store %arg8[%c0_101, %c19_102], %119 {strides = array<i32>} : memref<16x342xbf16, #tpu.memory_space<vmem>>, vector<16x288xbf16>,
    %c0_103 = arith.constant 0 : index
    %c0_104 = arith.constant 0 : index
    %121 = vector.load %arg8[%c0_103, %c0_104] : memref<16x342xbf16, #tpu.memory_space<vmem>>, vector<16x288xbf16>
    %c0_105 = arith.constant 0 : index
    %c1_106 = arith.constant 1 : index
    %122 = vector.load %arg8[%c0_105, %c1_106] : memref<16x342xbf16, #tpu.memory_space<vmem>>, vector<16x288xbf16>
    %c0_107 = arith.constant 0 : index
    %c2_108 = arith.constant 2 : index
    %123 = vector.load %arg8[%c0_107, %c2_108] : memref<16x342xbf16, #tpu.memory_space<vmem>>, vector<16x288xbf16>
    %c0_109 = arith.constant 0 : index
    %c18_110 = arith.constant 18 : index
    %124 = vector.load %arg8[%c0_109, %c18_110] : memref<16x342xbf16, #tpu.memory_space<vmem>>, vector<16x288xbf16>
    %c0_111 = arith.constant 0 : index
    %c19_112 = arith.constant 19 : index
    %125 = vector.load %arg8[%c0_111, %c19_112] : memref<16x342xbf16, #tpu.memory_space<vmem>>, vector<16x288xbf16>
    %c0_113 = arith.constant 0 : index
    %c20_114 = arith.constant 20 : index
    %126 = vector.load %arg8[%c0_113, %c20_114] : memref<16x342xbf16, #tpu.memory_space<vmem>>, vector<16x288xbf16>
    %c0_115 = arith.constant 0 : index
    %c36_116 = arith.constant 36 : index
    %127 = vector.load %arg8[%c0_115, %c36_116] : memref<16x342xbf16, #tpu.memory_space<vmem>>, vector<16x288xbf16>
    %c0_117 = arith.constant 0 : index
    %c37_118 = arith.constant 37 : index
    %128 = vector.load %arg8[%c0_117, %c37_118] : memref<16x342xbf16, #tpu.memory_space<vmem>>, vector<16x288xbf16>
    %c0_119 = arith.constant 0 : index
    %c38_120 = arith.constant 38 : index
    %129 = vector.load %arg8[%c0_119, %c38_120] : memref<16x342xbf16, #tpu.memory_space<vmem>>, vector<16x288xbf16>
    %c0_121 = arith.constant 0 : index
    %c0_122 = arith.constant 0 : index
    %c19_123 = arith.constant 19 : index
    %130 = vector.load %arg1[%c0_121, %c0_122, %c19_123] : memref<1x8x342xbf16, #tpu.memory_space<vmem>>, vector<1x8x288xbf16>
    %131 = vector.shape_cast %130 : vector<1x8x288xbf16> to vector<8x288xbf16>
    %132 = tpu.concatenate %121, %122, %123, %124, %125, %126, %127, %128, %129, %131 in 0 : vector<16x288xbf16>, vector<16x288xbf16>, vector<16x288xbf16>, vector<16x288xbf16>, vector<16x288xbf16>, vector<16x288xbf16>, vector<16x288xbf16>, vector<16x288xbf16>, vector<16x288xbf16>, vector<8x288xbf16> -> vector<152x288xbf16>
    %c0_124 = arith.constant 0 : index
    %c0_125 = arith.constant 0 : index
    %133 = vector.load %arg4[%c0_124, %c0_125] : memref<12x152xbf16, #tpu.memory_space<vmem>>, vector<12x152xbf16>
    %cst_126 = arith.constant dense<0.000000e+00> : vector<12x288xf32>
    %134 = tpu.matmul %133, %132, %cst_126 {dimension_numbers = #tpu.dot_dimension_numbers<[1], [0], [0], [1], [0, 0, 1, 1], [], []>} : vector<12x152xbf16>, vector<152x288xbf16>, vector<12x288xf32> -> vector<12x288xf32>
    %c0_127 = arith.constant 0 : index
    %c3 = arith.constant 3 : index
    %135 = vector.load %arg5[%c0_127, %c3] : memref<16x4xf32, #tpu.memory_space<vmem>>, vector<12x1xf32>
    %136 = vector.broadcast %135 : vector<12x1xf32> to vector<12x288xf32>
    %137 = arith.addf %134, %136 : vector<12x288xf32>
    %c0_128 = arith.constant 0 : index
    %c0_129 = arith.constant 0 : index
    %c0_130 = arith.constant 0 : index
    %138 = vector.load %arg7[%c0_128, %c0_129, %c0_130] : memref<1x12x288xf32, #tpu.memory_space<vmem>>, vector<1x12x288xf32>
    %139 = vector.shape_cast %138 : vector<1x12x288xf32> to vector<12x288xf32>
    %140 = vector.shape_cast %137 : vector<12x288xf32> to vector<1x12x288xf32>
    tpu.vector_store %arg7[%c0_128, %c0_129, %c0_130], %140 {strides = array<i32>} : memref<1x12x288xf32, #tpu.memory_space<vmem>>, vector<1x12x288xf32>,
    return
  }
  func.func @transform_0(%arg0: i32) -> (i32, i32, i32) {
    %c0_i32 = arith.constant 0 : i32
    %c0_i32_0 = arith.constant 0 : i32
    %c0_i32_1 = arith.constant 0 : i32
    return %arg0, %c0_i32, %c0_i32_0 : i32, i32, i32
  }
  func.func @transform_1(%arg0: i32) -> (i32, i32) {
    %c0_i32 = arith.constant 0 : i32
    %c0_i32_0 = arith.constant 0 : i32
    %c0_i32_1 = arith.constant 0 : i32
    return %c0_i32, %c0_i32_0 : i32, i32
  }
  func.func @transform_2(%arg0: i32) -> (i32, i32, i32) {
    %c0_i32 = arith.constant 0 : i32
    %c0_i32_0 = arith.constant 0 : i32
    %c0_i32_1 = arith.constant 0 : i32
    %c0_i32_2 = arith.constant 0 : i32
    return %c0_i32, %c0_i32_0, %c0_i32_1 : i32, i32, i32
  }
  func.func @transform_3(%arg0: i32) -> (i32, i32) {
    %c0_i32 = arith.constant 0 : i32
    %c0_i32_0 = arith.constant 0 : i32
    %c0_i32_1 = arith.constant 0 : i32
    return %c0_i32, %c0_i32_0 : i32, i32
  }
  func.func @transform_4(%arg0: i32) -> (i32, i32) {
    %c0_i32 = arith.constant 0 : i32
    %c0_i32_0 = arith.constant 0 : i32
    %c0_i32_1 = arith.constant 0 : i32
    return %c0_i32, %c0_i32_0 : i32, i32
  }
  func.func @transform_5(%arg0: i32) -> (i32, i32) {
    %c0_i32 = arith.constant 0 : i32
    %c0_i32_0 = arith.constant 0 : i32
    %c0_i32_1 = arith.constant 0 : i32
    return %c0_i32, %c0_i32_0 : i32, i32
  }
  func.func @transform_6(%arg0: i32) -> (i32, i32, i32) {
    %c0_i32 = arith.constant 0 : i32
    %c0_i32_0 = arith.constant 0 : i32
    %c0_i32_1 = arith.constant 0 : i32
    return %arg0, %c0_i32, %c0_i32_0 : i32, i32, i32
  }
}

</mosaic_0001>

<llo_original>
// kernel: tpu_custom_call.1
$region0: #{tpu_custom_call.1}
  #allocation0 [shape = 'u32[]', space=smem, size = 0x4, offset = 0x4, fixed_abs, tag = 'smem constant byte address 0x4 - core index']
  #allocation1 [shape = 'u32[144,128]{1,0:T(1,128)}', space=vmem, size = 0x12000, scoped, tag = 'internal scratch']
  #allocation2 [shape = 'bf16[16,342]{1,0:T(16,128)(2,1)}', space=vmem, size = 0x3000, scoped, tag = 'scratch operand']
  #allocation3 [shape = 'bf16[16,342]{1,0:T(16,128)(2,1)}', space=vmem, size = 0x3000, scoped, tag = 'scratch operand']
  %s0 = inlined_call_operand.hbm [shape: bf16[2,8,342], index: 0, kind: input, shape index: {}]
  %s1 = inlined_call_operand.hbm [shape: bf16[16,72], index: 1, kind: input, shape index: {}]
  %s2 = inlined_call_operand.vmem [shape: bf16[2,16,144], index: 2, kind: input, shape index: {}]
  %s3 = inlined_call_operand.vmem [shape: bf16[12,152], index: 3, kind: input, shape index: {}]
  %s4 = inlined_call_operand.vmem [shape: f32[16,4], index: 4, kind: input, shape index: {}]
  %s5 = inlined_call_operand.vmem [shape: f32[16,3], index: 5, kind: input, shape index: {}]
  %s6 = inlined_call_operand.vmem [shape: f32[2,12,288], index: 6, kind: output, shape index: {}]
  %s7 = sld [smem:[#allocation0]]
  $region65: #{tpu_custom_call.1} parent=0
    _
  %s9 = ssub.s32 1, %s7
  %s10 = scalar_select 0, %s9, %s7
  $region1: #{tpu_custom_call.1} parent=0
    #allocation4 [shape = 'u8[12288]{0}', space=vmem, size = 0x3000, scoped, tag = 'input window, operand 0']
    #allocation5 [shape = 's32[2]{0}', space=sflag, size = 0x8, scoped, tag = 'scoped memory for tpu_custom_call.1']
    #allocation6 [shape = 'u8[4096]{0}', space=vmem, size = 0x1000, scoped, tag = 'input window, operand 1, single buffered']
    #allocation7 [shape = 's32[1]{0}', space=sflag, size = 0x4, scoped, tag = 'scoped memory for tpu_custom_call.1']
    %11 = vsyncpa [#allocation5], 0
    %s12 = scalar_lea.sflag [#allocation5], 1
    %13 = vsyncpa %s12, 0
    %14 = vsyncpa [#allocation7], 0
    loop: start=0, step=1, limit=4
    $region2: #{tpu_custom_call.1} parent=1 // loop_pre_header
      _
    $region3: #{tpu_custom_call.1} parent=1 // loop_header
      %s16 = sphi 0, %s20
      %p17 = scmp.ge.s32.totalorder %s16, 4
      %s26 = sphi 0, %s28
      %s29 = sphi 0, %s26
      %s30 = sphi 0, %s29
      %s46 = sphi 0, %s30
      %s50 = sphi 0, %s50
      %s52 = sphi 0, %s50
      %s53 = sphi 0, %s52
      %s67 = sphi 0, %s53
      %s71 = sphi 0, %s71
      %s73 = sphi 0, %s71
      %s74 = sphi 0, %s73
      %s88 = sphi 0, %s74
      %s92 = sphi 0, %s92
      %s94 = sphi 0, %s92
      %s95 = sphi 0, %s94
      %s109 = sphi 0, %s95
      %s113 = sphi 0, %s113
      %s115 = sphi 0, %s113
      %s116 = sphi 0, %s115
      %s130 = sphi 0, %s116
      %s134 = sphi 0, %s134
      %s136 = sphi 0, %s134
      %s137 = sphi 0, %s136
      %s151 = sphi 0, %s137
      %s157 = sphi 0, %s159
      %s160 = sphi 0, %s157
      %s161 = sphi 0, %s160
      %s177 = sphi 0, %s161
    $region4: #{tpu_custom_call.1} parent=1 // loop_header_branch
      %19 = sbr.rel (%p17) target = $region8
    $region5: #{tpu_custom_call.1} parent=1 // loop_body
      %s21 = ssub.s32 %s16, 1
      %s22 = ssub.s32 %s16, 2
      %s23 = sadd.s32 %s16, 1
      %s24 = ssub.s32 %s16, %s23
      %p25 = scmp.eq.s32.totalorder %s24, 0
      %s27 = sadd.s32 %s26, 1
      %s28 = scalar_select %p25, %s26, %s27
      %p31 = pneg %p25
      %p32 = scmp.eq.s32.totalorder %s16, 1
      %p33 = por %p31, %p32
      %p34 = scmp.ne.s32.totalorder %s26, %s29
      %p35 = scmp.eq.s32.totalorder %s16, 0
      %p36 = por %p34, %p35
      %p37 = scmp.ne.s32.totalorder %s26, %s29
      %p38 = scmp.eq.s32.totalorder %s21, 1
      %p39 = por %p37, %p38
      %p40 = scmp.ne.s32.totalorder %s29, %s30
      %p41 = scmp.eq.s32.totalorder %s21, 0
      %p42 = por %p40, %p41
      %p43 = scmp.ne.s32.totalorder %s29, %s30
      %p44 = scmp.eq.s32.totalorder %s22, 1
      %p45 = por %p43, %p44
      %p47 = scmp.ne.s32.totalorder %s30, %s46
      %p48 = scmp.eq.s32.totalorder %s22, 0
      %p49 = por %p47, %p48
      %s51 = sadd.s32 %s50, 1
      %p54 = scmp.eq.s32.totalorder %s16, 1
      %p55 = scmp.ne.s32.totalorder %s50, %s52
      %p56 = scmp.eq.s32.totalorder %s16, 0
      %p57 = por %p55, %p56
      %p58 = scmp.ne.s32.totalorder %s50, %s52
      %p59 = scmp.eq.s32.totalorder %s21, 1
      %p60 = por %p58, %p59
      %p61 = scmp.ne.s32.totalorder %s52, %s53
      %p62 = scmp.eq.s32.totalorder %s21, 0
      %p63 = por %p61, %p62
      %p64 = scmp.ne.s32.totalorder %s52, %s53
      %p65 = scmp.eq.s32.totalorder %s22, 1
      %p66 = por %p64, %p65
      %p68 = scmp.ne.s32.totalorder %s53, %s67
      %p69 = scmp.eq.s32.totalorder %s22, 0
      %p70 = por %p68, %p69
      %s72 = sadd.s32 %s71, 1
      %p75 = scmp.eq.s32.totalorder %s16, 1
      %p76 = scmp.ne.s32.totalorder %s71, %s73
      %p77 = scmp.eq.s32.totalorder %s16, 0
      %p78 = por %p76, %p77
      %p79 = scmp.ne.s32.totalorder %s71, %s73
      %p80 = scmp.eq.s32.totalorder %s21, 1
      %p81 = por %p79, %p80
      %p82 = scmp.ne.s32.totalorder %s73, %s74
      %p83 = scmp.eq.s32.totalorder %s21, 0
      %p84 = por %p82, %p83
      %p85 = scmp.ne.s32.totalorder %s73, %s74
      %p86 = scmp.eq.s32.totalorder %s22, 1
      %p87 = por %p85, %p86
      %p89 = scmp.ne.s32.totalorder %s74, %s88
      %p90 = scmp.eq.s32.totalorder %s22, 0
      %p91 = por %p89, %p90
      %s93 = sadd.s32 %s92, 1
      %p96 = scmp.eq.s32.totalorder %s16, 1
      %p97 = scmp.ne.s32.totalorder %s92, %s94
      %p98 = scmp.eq.s32.totalorder %s16, 0
      %p99 = por %p97, %p98
      %p100 = scmp.ne.s32.totalorder %s92, %s94
      %p101 = scmp.eq.s32.totalorder %s21, 1
      %p102 = por %p100, %p101
      %p103 = scmp.ne.s32.totalorder %s94, %s95
      %p104 = scmp.eq.s32.totalorder %s21, 0
      %p105 = por %p103, %p104
      %p106 = scmp.ne.s32.totalorder %s94, %s95
      %p107 = scmp.eq.s32.totalorder %s22, 1
      %p108 = por %p106, %p107
      %p110 = scmp.ne.s32.totalorder %s95, %s109
      %p111 = scmp.eq.s32.totalorder %s22, 0
      %p112 = por %p110, %p111
      %s114 = sadd.s32 %s113, 1
      %p117 = scmp.eq.s32.totalorder %s16, 1
      %p118 = scmp.ne.s32.totalorder %s113, %s115
      %p119 = scmp.eq.s32.totalorder %s16, 0
      %p120 = por %p118, %p119
      %p121 = scmp.ne.s32.totalorder %s113, %s115
      %p122 = scmp.eq.s32.totalorder %s21, 1
      %p123 = por %p121, %p122
      %p124 = scmp.ne.s32.totalorder %s115, %s116
      %p125 = scmp.eq.s32.totalorder %s21, 0
      %p126 = por %p124, %p125
      %p127 = scmp.ne.s32.totalorder %s115, %s116
      %p128 = scmp.eq.s32.totalorder %s22, 1
      %p129 = por %p127, %p128
      %p131 = scmp.ne.s32.totalorder %s116, %s130
      %p132 = scmp.eq.s32.totalorder %s22, 0
      %p133 = por %p131, %p132
      %s135 = sadd.s32 %s134, 1
      %p138 = scmp.eq.s32.totalorder %s16, 1
      %p139 = scmp.ne.s32.totalorder %s134, %s136
      %p140 = scmp.eq.s32.totalorder %s16, 0
      %p141 = por %p139, %p140
      %p142 = scmp.ne.s32.totalorder %s134, %s136
      %p143 = scmp.eq.s32.totalorder %s21, 1
      %p144 = por %p142, %p143
      %p145 = scmp.ne.s32.totalorder %s136, %s137
      %p146 = scmp.eq.s32.totalorder %s21, 0
      %p147 = por %p145, %p146
      %p148 = scmp.ne.s32.totalorder %s136, %s137
      %p149 = scmp.eq.s32.totalorder %s22, 1
      %p150 = por %p148, %p149
      %p152 = scmp.ne.s32.totalorder %s137, %s151
      %p153 = scmp.eq.s32.totalorder %s22, 0
      %p154 = por %p152, %p153
      %s155 = ssub.s32 %s16, %s23
      %p156 = scmp.eq.s32.totalorder %s155, 0
      %s158 = sadd.s32 %s157, 1
      %s159 = scalar_select %p156, %s157, %s158
      %p162 = pneg %p156
      %p163 = scmp.eq.s32.totalorder %s16, 1
      %p164 = por %p162, %p163
      %p165 = scmp.ne.s32.totalorder %s157, %s160
      %p166 = scmp.eq.s32.totalorder %s16, 0
      %p167 = por %p165, %p166
      %p168 = scmp.ne.s32.totalorder %s157, %s160
      %p169 = scmp.eq.s32.totalorder %s21, 1
      %p170 = por %p168, %p169
      %p171 = scmp.ne.s32.totalorder %s160, %s161
      %p172 = scmp.eq.s32.totalorder %s21, 0
      %p173 = por %p171, %p172
      %p174 = scmp.ne.s32.totalorder %s160, %s161
      %p175 = scmp.eq.s32.totalorder %s22, 1
      %p176 = por %p174, %p175
      %p178 = scmp.ne.s32.totalorder %s161, %s177
      %p179 = scmp.eq.s32.totalorder %s22, 0
      %p180 = por %p178, %p179
      %p181 = scmp.le.s32.totalorder 1, %s16
      %p182 = scmp.lt.s32.totalorder %s16, 3
      %p183 = pnand %p181, %p182
      %p184 = pneg %p183
      // Predicated region
      $region9: #{tpu_custom_call.1} parent=5 // pred_check
        _
      $region10: #{tpu_custom_call.1} parent=5 // pred_check_branch
        %186 = sbr.rel (%p183) target = $region12
      $region11: #{tpu_custom_call.1} parent=5 // pred_region
        %s187 = ssub.s32 %s16, 1
        // Predicated region
        $region13: #{tpu_custom_call.1} parent=11 // pred_check
          %p188 = pneg %p63
        $region14: #{tpu_custom_call.1} parent=11 // pred_check_branch
          %190 = sbr.rel (%p188) target = $region16
        $region15: #{tpu_custom_call.1} parent=11 // pred_region
          %s192 = ssub.s32 128, 128
          %193 = vsyncadd [#allocation7], %s192
          %s194 = sshll.u32 [#allocation6], 4
          %s195 = int_to_ptr.vmem [resolvable:$true] %s194
          %200 = dma.hbm_to_vmem [thread:$0]  %s1, 128, %s195, [#allocation7], 64, 64, 4
        $region16: #{tpu_custom_call.1} parent=11 // pred_fallthru
          _
        // Predicated region
        $region17: #{tpu_custom_call.1} parent=11 // pred_check
          %p201 = pneg %p84
        $region18: #{tpu_custom_call.1} parent=11 // pred_check_branch
          %203 = sbr.rel (%p201) target = $region20
        $region19: #{tpu_custom_call.1} parent=11 // pred_region
          _
        $region20: #{tpu_custom_call.1} parent=11 // pred_fallthru
          _
        // Predicated region
        $region21: #{tpu_custom_call.1} parent=11 // pred_check
          %p204 = pneg %p105
        $region22: #{tpu_custom_call.1} parent=11 // pred_check_branch
          %206 = sbr.rel (%p204) target = $region24
        $region23: #{tpu_custom_call.1} parent=11 // pred_region
          _
        $region24: #{tpu_custom_call.1} parent=11 // pred_fallthru
          _
        // Predicated region
        $region25: #{tpu_custom_call.1} parent=11 // pred_check
          %p207 = pneg %p126
        $region26: #{tpu_custom_call.1} parent=11 // pred_check_branch
          %209 = sbr.rel (%p207) target = $region28
        $region27: #{tpu_custom_call.1} parent=11 // pred_region
          _
        $region28: #{tpu_custom_call.1} parent=11 // pred_fallthru
          _
        // Predicated region
        $region29: #{tpu_custom_call.1} parent=11 // pred_check
          %p210 = pneg %p147
        $region30: #{tpu_custom_call.1} parent=11 // pred_check_branch
          %212 = sbr.rel (%p210) target = $region32
        $region31: #{tpu_custom_call.1} parent=11 // pred_region
          _
        $region32: #{tpu_custom_call.1} parent=11 // pred_fallthru
          _
      $region12: #{tpu_custom_call.1} parent=5 // pred_fallthru
        _
      %p213 = scmp.lt.s32.totalorder %s16, 2
      // Predicated region
      $region33: #{tpu_custom_call.1} parent=5 // pred_check
        %p214 = pneg %p213
      $region34: #{tpu_custom_call.1} parent=5 // pred_check_branch
        %216 = sbr.rel (%p214) target = $region36
      $region35: #{tpu_custom_call.1} parent=5 // pred_region
        // Predicated region
        $region37: #{tpu_custom_call.1} parent=35 // pred_check
          %p217 = pneg %p36
        $region38: #{tpu_custom_call.1} parent=35 // pred_check_branch
          %219 = sbr.rel (%p217) target = $region40
        $region39: #{tpu_custom_call.1} parent=35 // pred_region
          %s220 = sand.u32 %s26, 1
          %s221 = scalar_lea.sflag [#allocation5], %s220
          %s222 = sand.u32 %s26, 1
          %s223 = smul.addr %s222, 12
          %s224 = scalar_lea.vmem [#allocation4], %s223
          %s226 = ssub.s32 192, 192
          %227 = vsyncadd %s221, %s226
          %s228 = smul.addr %s16, 3
          %s229 = smul.addr %s228, 64
          %s230 = scalar_lea.hbm %s0, %s229
          %s232 = sshll.u32 %s224, 4
          %s233 = int_to_ptr.vmem [resolvable:$true] %s232
          %235 = dma.hbm_to_vmem [thread:$0]  %s230, 192, %s233, %s221
        $region40: #{tpu_custom_call.1} parent=35 // pred_fallthru
          _
      $region36: #{tpu_custom_call.1} parent=5 // pred_fallthru
        _
      %p236 = scmp.le.s32.totalorder 1, %s16
      %p237 = scmp.lt.s32.totalorder %s16, 3
      %p238 = pnand %p236, %p237
      %p239 = pneg %p238
      // Predicated region
      $region41: #{tpu_custom_call.1} parent=5 // pred_check
        _
      $region42: #{tpu_custom_call.1} parent=5 // pred_check_branch
        %241 = sbr.rel (%p238) target = $region44
      $region43: #{tpu_custom_call.1} parent=5 // pred_region
        %s242 = ssub.s32 %s16, 1
        %s243 = sand.u32 %s29, 1
        %s244 = scalar_lea.sflag [#allocation5], %s243
        %s245 = sand.u32 %s29, 1
        %s246 = smul.addr %s245, 12
        %s247 = scalar_lea.vmem [#allocation4], %s246
        // Predicated region
        $region45: #{tpu_custom_call.1} parent=43 // pred_check
          %p248 = pneg %p42
        $region46: #{tpu_custom_call.1} parent=43 // pred_check_branch
          %250 = sbr.rel (%p248) target = $region48
        $region47: #{tpu_custom_call.1} parent=43 // pred_region
          %251 = dma.done %s244, 192
        $region48: #{tpu_custom_call.1} parent=43 // pred_fallthru
          _
        // Predicated region
        $region49: #{tpu_custom_call.1} parent=43 // pred_check
          %p252 = pneg %p63
        $region50: #{tpu_custom_call.1} parent=43 // pred_check_branch
          %254 = sbr.rel (%p252) target = $region52
        $region51: #{tpu_custom_call.1} parent=43 // pred_region
          %255 = dma.done [#allocation7], 128
        $region52: #{tpu_custom_call.1} parent=43 // pred_fallthru
          _
        %s256 = sand.u32 %s29, 1
        %s257 = scalar_lea.sflag [#allocation5], %s256
        %s258 = sand.u32 %s29, 1
        %s259 = smul.addr %s258, 12
        %s260 = scalar_lea.vmem [#allocation4], %s259
        %p261 = pneg %p42
        %p262 = pneg %p39
        %p263 = pneg %p63
        %p264 = pneg %p60
        %p265 = pneg %p84
        %p266 = pneg %p81
        %p267 = pneg %p105
        %p268 = pneg %p102
        %p269 = pneg %p126
        %p270 = pneg %p123
        %p271 = pneg %p147
        %p272 = pneg %p144
        %p273 = pneg %p173
        %p274 = pneg %p170
        %p275 = scmp.lt.s32.totalorder %s21, 1
        %s276 = scalar_select %p275, %s21, 1
        %s277 = smul.addr %s276, 6
        %s278 = smul.addr %s277, 8
        %s279 = scalar_lea.vmem %s6, %s278
        %p280 = scmp.lt.s32.totalorder %s21, 1
        %s281 = scalar_select %p280, %s21, 1
        %s282 = smul.addr %s281, 6
        %s283 = smul.addr %s282, 8
        %s284 = scalar_lea.vmem %s6, %s283
        %vm286 = vcmask 154624
        %287 = vst.msk [vmem:[#allocation2] sm:$0xff] %vm286, 0
        %vm288 = vcmask 703896
        %289 = vst.msk [vmem:[#allocation2 + $0x10] sm:$0xff] %vm288, 0
        %290 = vst.msk [vmem:[#allocation3] sm:$0xff] %vm286, 0
        %291 = vst.msk [vmem:[#allocation3 + $0x10] sm:$0xff] %vm288, 0
        %v292 = vlaneseq
        %v293 = vand.u32 %v292, 127
        %v294 = vadd.s32 %v293, 128
        %v295 = vadd.s32 %v293, 256
        %v296 = vcvt.s32.f32 %v293
        %v297 = vcvt.s32.f32 %v294
        %v298 = vcvt.s32.f32 %v295
        %v299 = vmul.f32 %v296, 0.055555556
        %v300 = vmul.f32 %v297, 0.055555556
        %v301 = vmul.f32 %v298, 0.055555556
        %v302 = vfloor.f32 %v299
        %v303 = vfloor.f32 %v300
        %v304 = vfloor.f32 %v301
        %v305 = vcvt.f32.s32.to.zero.pseudo %v302
        %v306 = vcvt.f32.s32.to.zero.pseudo %v303
        %v307 = vcvt.f32.s32.to.zero.pseudo %v304
        %v308 = vmul.u32 %v305, 18
        %v309 = vmul.u32 %v306, 18
        %v310 = vmul.u32 %v307, 18
        %v311 = vsub.s32 %v293, %v308
        %v312 = vsub.s32 %v294, %v309
        %v313 = vsub.s32 %v295, %v310
        %vm314 = vcmp.lt.s32.totalorder %v311, 0
        %vm315 = vcmp.lt.s32.totalorder %v312, 0
        %vm316 = vcmp.lt.s32.totalorder %v313, 0
        %v317 = vadd.s32 %v311, 18
        %v318 = vadd.s32 %v312, 18
        %v319 = vadd.s32 %v313, 18
        %vm320 = vcmp.ge.s32.totalorder %v311, 18
        %vm321 = vcmp.ge.s32.totalorder %v312, 18
        %vm322 = vcmp.ge.s32.totalorder %v313, 18
        %v323 = vsub.s32 %v311, 18
        %v324 = vsub.s32 %v312, 18
        %v325 = vsub.s32 %v313, 18
        %v326 = vsel %vm320, %v323, %v311
        %v327 = vsel %vm321, %v324, %v312
        %v328 = vsel %vm322, %v325, %v313
        %v329 = vsel %vm314, %v317, %v326
        %v330 = vsel %vm315, %v318, %v327
        %v331 = vsel %vm316, %v319, %v328
        %vm332 = vcmp.lt.s32.totalorder %v329, 16
        %vm333 = vcmp.lt.s32.totalorder %v330, 16
        %vm334 = vcmp.lt.s32.totalorder %v331, 16
        %v335 = vld [vmem:[%s247] sm:$0xff]
        %v336 = vld [vmem:[%s247 + $0x8] sm:$0xf]
        %v339 = vunpack.c.l.b16 %v335
        %v340 = vunpack.c.h.b16 %v335
        %v341 = vunpack.c.l.b16 %v336
        %v342 = vpack.c.b16 %v339, %v339
        %v343 = vpack.c.b16 %v340, %v340
        %v344 = vpack.c.b16 %v341, %v341
        %345 = vrot.lane.b32.xlu0 %v342, 127
        %v346 = vpop.permute.xlu0 %345
        %347 = vrot.lane.b32.xlu0 %v343, 127
        %v348 = vpop.permute.xlu0 %347
        %349 = vrot.lane.b32.xlu0 %v344, 127
        %v350 = vpop.permute.xlu0 %349
        %vm351 = vcmask 1039360
        %v352 = vsel %vm351, %v346, %v348
        %v353 = vsel %vm351, %v348, %v350
        %354 = vrot.lane.b32.xlu0 %v342, 126
        %v355 = vpop.permute.xlu0 %354
        %356 = vrot.lane.b32.xlu0 %v343, 126
        %v357 = vpop.permute.xlu0 %356
        %358 = vrot.lane.b32.xlu0 %v344, 126
        %v359 = vpop.permute.xlu0 %358
        %vm360 = vcmask 1031168
        %v361 = vsel %vm360, %v355, %v357
        %v362 = vsel %vm360, %v357, %v359
        %363 = vrot.lane.b32.xlu0 %v342, 110
        %v364 = vpop.permute.xlu0 %363
        %365 = vrot.lane.b32.xlu0 %v343, 110
        %v366 = vpop.permute.xlu0 %365
        %367 = vrot.lane.b32.xlu0 %v344, 110
        %v368 = vpop.permute.xlu0 %367
        %vm369 = vcmask 900096
        %v370 = vsel %vm369, %v364, %v366
        %v371 = vsel %vm369, %v366, %v368
        %372 = vrot.lane.b32.xlu0 %v342, 109
        %v373 = vpop.permute.xlu0 %372
        %374 = vrot.lane.b32.xlu0 %v343, 109
        %v375 = vpop.permute.xlu0 %374
        %376 = vrot.lane.b32.xlu0 %v344, 109
        %v377 = vpop.permute.xlu0 %376
        %vm378 = vcmask 891904
        %v379 = vsel %vm378, %v373, %v375
        %v380 = vsel %vm378, %v375, %v377
        %381 = vrot.lane.b32.xlu0 %v342, 108
        %v382 = vpop.permute.xlu0 %381
        %383 = vrot.lane.b32.xlu0 %v343, 108
        %v384 = vpop.permute.xlu0 %383
        %385 = vrot.lane.b32.xlu0 %v344, 108
        %v386 = vpop.permute.xlu0 %385
        %vm387 = vcmask 883712
        %v388 = vsel %vm387, %v382, %v384
        %v389 = vsel %vm387, %v384, %v386
        %390 = vrot.lane.b32.xlu0 %v342, 92
        %v391 = vpop.permute.xlu0 %390
        %392 = vrot.lane.b32.xlu0 %v343, 92
        %v393 = vpop.permute.xlu0 %392
        %394 = vrot.lane.b32.xlu0 %v344, 92
        %v395 = vpop.permute.xlu0 %394
        %vm396 = vcmask 752640
        %v397 = vsel %vm396, %v391, %v393
        %v398 = vsel %vm396, %v393, %v395
        %399 = vrot.lane.b32.xlu0 %v342, 91
        %v400 = vpop.permute.xlu0 %399
        %401 = vrot.lane.b32.xlu0 %v343, 91
        %v402 = vpop.permute.xlu0 %401
        %403 = vrot.lane.b32.xlu0 %v344, 91
        %v404 = vpop.permute.xlu0 %403
        %vm405 = vcmask 744448
        %v406 = vsel %vm405, %v400, %v402
        %v407 = vsel %vm405, %v402, %v404
        %408 = vrot.lane.b32.xlu0 %v342, 90
        %v409 = vpop.permute.xlu0 %408
        %410 = vrot.lane.b32.xlu0 %v343, 90
        %v411 = vpop.permute.xlu0 %410
        %412 = vrot.lane.b32.xlu0 %v344, 90
        %v413 = vpop.permute.xlu0 %412
        %vm414 = vcmask 736256
        %v415 = vsel %vm414, %v409, %v411
        %v416 = vsel %vm414, %v411, %v413
        %vm417 = vcmask 1043456
        %v420 = vsel %vm417, %v342, %v352
        %v424 = vsel %vm417, %v343, %v353
        %v428 = vsel %vm417, %v344, %v350
        %v432 = vsel %vm417, %v361, %v370
        %v436 = vsel %vm417, %v362, %v371
        %v440 = vsel %vm417, %v359, %v368
        %v444 = vsel %vm417, %v379, %v388
        %v448 = vsel %vm417, %v380, %v389
        %v452 = vsel %vm417, %v377, %v386
        %v456 = vsel %vm417, %v397, %v406
        %v460 = vsel %vm417, %v398, %v407
        %v464 = vsel %vm417, %v395, %v404
        %v466 = vld [vmem:[#allocation6] sm:$0xf]
        %v467 = vld [vmem:[#allocation6 + $0x4] sm:$0xf]
        %v468 = vld [vmem:[%s4] sm:$0xff]
        %v469 = vld [vmem:[%s4 + $0x8] sm:$0xff]
        %471 = vset.pattern.permute.xlu0 0
        %472 = vperm.xlu0 %471, %v468
        %v473 = vpop.permute.xlu0 %472
        %476 = vset.pattern.permute.xlu0 0
        %477 = vperm.xlu0 %476, %v469
        %v478 = vpop.permute.xlu0 %477
        %v482 = vunpack.c.l.b16 %v466
        %v483 = vunpack.c.l.b16 %v467
        %v484 = vpack.c.b16 %v483, %v482
        %vm485 = vcmask 588800
        %v487 = vsel %vm485, %v484, 0
        %v490 = vsel %vm417, %v415, 0
        %v493 = vsel %vm417, %v416, 0
        %v496 = vsel %vm417, %v413, 0
        %498 = vmatprep.subr.bf16.mxu0 %v424
        %499 = vmatpush1.bf16.msra.mxu0 %v420
        %500 = vmatprep.subr.bf16.mxu0 %v436
        %501 = vmatpush1.bf16.msra.mxu0 %v432
        %502 = vmatprep.subr.bf16.mxu0 %v448
        %503 = vmatpush1.bf16.msra.mxu0 %v444
        %504 = vmatprep.subr.bf16.mxu0 %v460
        %505 = vmatpush1.bf16.msra.mxu0 %v456
        %506 = vmatprep.subr.bf16.mxu0 %v493
        %507 = vmatpush1.bf16.msra.mxu0 %v490
        %508 = vmatprep.subr.bf16.mxu0 0
        %509 = vmatpush1.bf16.msra.mxu0 0
        %510 = vmatprep.subr.bf16.mxu0 0
        %511 = vmatpush1.bf16.msra.mxu0 0
        %512 = vmatprep.subr.bf16.mxu0 0
        %513 = vmatpush1.bf16.msra.mxu0 0
        %514 = vmatprep.subr.bf16.mxu0 0
        %515 = vmatpush1.bf16.msra.mxu0 0
        %516 = vmatprep.subr.bf16.mxu0 0
        %517 = vmatpush1.bf16.msra.mxu0 0
        %518 = vmatprep.subr.bf16.mxu0 0
        %519 = vmatpush1.bf16.msra.mxu0 0
        %520 = vmatprep.subr.bf16.mxu0 0
        %521 = vmatpush1.bf16.msra.mxu0 0
        %522 = vmatprep.subr.bf16.mxu0 0
        %523 = vmatpush1.bf16.msra.mxu0 0
        %524 = vmatprep.subr.bf16.mxu0 0
        %525 = vmatpush1.bf16.msra.mxu0 0
        %526 = vmatprep.subr.bf16.mxu0 0
        %527 = vmatpush1.bf16.msra.mxu0 0
        %528 = vmatprep.subr.bf16.mxu0 0
        %529 = vmatpush1.bf16.msra.mxu0 0
        %530 = vmatprep.mubr.bf16.mxu0 0
        %531 = vmatmul.mubr.bf16.gmra.mrb[0].mxu0 %v487
        %v532 = vpop.f32.mrb[0].mxu0
        %v533 = vadd.f32 %v473, %v532
        %v534 = vpop.f32.mrb[0].mxu0
        %v535 = vadd.f32 %v473, %v534
        %v536 = vpop.f32.mrb[0].mxu0
        %v537 = vadd.f32 %v478, %v536
        %v538 = vpop.f32.mrb[0].mxu0
        %v539 = vadd.f32 %v478, %v538
        %540 = vdwg.mxu0
        %541 = vmatprep.subr.bf16.mxu0 0
        %542 = vmatpush1.bf16.msra.mxu0 %v428
        %543 = vmatprep.subr.bf16.mxu0 0
        %544 = vmatpush1.bf16.msra.mxu0 %v440
        %545 = vmatprep.subr.bf16.mxu0 0
        %546 = vmatpush1.bf16.msra.mxu0 %v452
        %547 = vmatprep.subr.bf16.mxu0 0
        %548 = vmatpush1.bf16.msra.mxu0 %v464
        %549 = vmatprep.subr.bf16.mxu0 0
        %550 = vmatpush1.bf16.msra.mxu0 %v496
        %551 = vmatprep.subr.bf16.mxu0 0
        %552 = vmatpush1.bf16.msra.mxu0 0
        %553 = vmatprep.subr.bf16.mxu0 0
        %554 = vmatpush1.bf16.msra.mxu0 0
        %555 = vmatprep.subr.bf16.mxu0 0
        %556 = vmatpush1.bf16.msra.mxu0 0
        %557 = vmatprep.subr.bf16.mxu0 0
        %558 = vmatpush1.bf16.msra.mxu0 0
        %559 = vmatprep.subr.bf16.mxu0 0
        %560 = vmatpush1.bf16.msra.mxu0 0
        %561 = vmatprep.subr.bf16.mxu0 0
        %562 = vmatpush1.bf16.msra.mxu0 0
        %563 = vmatprep.subr.bf16.mxu0 0
        %564 = vmatpush1.bf16.msra.mxu0 0
        %565 = vmatprep.subr.bf16.mxu0 0
        %566 = vmatpush1.bf16.msra.mxu0 0
        %567 = vmatprep.subr.bf16.mxu0 0
        %568 = vmatpush1.bf16.msra.mxu0 0
        %569 = vmatprep.subr.bf16.mxu0 0
        %570 = vmatpush1.bf16.msra.mxu0 0
        %571 = vmatprep.subr.bf16.mxu0 0
        %572 = vmatpush1.bf16.msra.mxu0 0
        %573 = vmatprep.mubr.bf16.mxu0 0
        %574 = vmatmul.mubr.bf16.gmra.mrb[0].mxu0 %v487
        %v575 = vpop.f32.mrb[0].mxu0
        %v576 = vadd.f32 %v473, %v575
        %v577 = vpop.f32.mrb[0].mxu0
        %v578 = vpop.f32.mrb[0].mxu0
        %v579 = vadd.f32 %v478, %v578
        %v580 = vpop.f32.mrb[0].mxu0
        %581 = vdwg.mxu0
        %vm582 = vcmp.ge.f32.partialorder %v533, 0.0
        %vm583 = vcmp.ge.f32.partialorder %v535, 0.0
        %vm584 = vcmp.ge.f32.partialorder %v576, 0.0
        %vm585 = vcmp.ge.f32.partialorder %v537, 0.0
        %vm586 = vcmp.ge.f32.partialorder %v539, 0.0
        %vm587 = vcmp.ge.f32.partialorder %v579, 0.0
        %v588 = vld [vmem:[%s5] sm:$0xff]
        %v589 = vld [vmem:[%s5 + $0x8] sm:$0xff]
        %591 = vset.pattern.permute.xlu0 0
        %592 = vperm.xlu0 %591, %v588
        %v593 = vpop.permute.xlu0 %592
        %596 = vset.pattern.permute.xlu0 0
        %597 = vperm.xlu0 %596, %v589
        %v598 = vpop.permute.xlu0 %597
        %v600 = vmul.f32 %v533, %v593
        %v601 = vmul.f32 %v535, %v593
        %v602 = vmul.f32 %v576, %v593
        %v603 = vmul.f32 %v537, %v598
        %v604 = vmul.f32 %v539, %v598
        %v605 = vmul.f32 %v579, %v598
        %v606 = vsel %vm582, %v533, %v600
        %v607 = vsel %vm583, %v535, %v601
        %v608 = vsel %vm584, %v576, %v602
        %v609 = vsel %vm585, %v537, %v603
        %v610 = vsel %vm586, %v539, %v604
        %v611 = vsel %vm587, %v579, %v605
        %v612 = vsel %vm332, 1, 0
        %v613 = vsel %vm333, 1, 0
        %v614 = vsel %vm334, 1, 0
        %vm615 = vcmp.eq.s32.totalorder %v612, 1
        %vm616 = vcmp.eq.s32.totalorder %v613, 1
        %vm617 = vcmp.eq.s32.totalorder %v614, 1
        %v618 = vsel %vm615, %v606, 0.0
        %v619 = vsel %vm616, %v607, 0.0
        %v620 = vsel %vm617, %v608, 0.0
        %v621 = vsel %vm615, %v609, 0.0
        %v622 = vsel %vm616, %v610, 0.0
        %v623 = vsel %vm617, %v611, 0.0
        %v624 = vpack.c.bf16 %v621, %v618
        %v625 = vpack.c.bf16 %v622, %v619
        %v626 = vpack.c.bf16 %v623, %v620
        %630 = vrot.lane.b32.xlu0 %v624, 19
        %v631 = vpop.permute.xlu0 %630
        %632 = vrot.lane.b32.xlu0 %v625, 19
        %v633 = vpop.permute.xlu0 %632
        %634 = vrot.lane.b32.xlu0 %v626, 19
        %v635 = vpop.permute.xlu0 %634
        %vm636 = vcmask 154624
        %v637 = vsel %vm636, %v631, %v633
        %v638 = vsel %vm636, %v633, %v635
        %vm642 = vcmask 1047704
        %643 = vst.msk [vmem:[#allocation2] sm:$0xff] %vm642, %v631
        %644 = vst [vmem:[#allocation2 + $0x8] sm:$0xff] %v637
        %vm645 = vcmask 416768
        %646 = vst.msk [vmem:[#allocation2 + $0x10] sm:$0xff] %vm645, %v638
        %v647 = vld [vmem:[#allocation2] sm:$0xff]
        %v648 = vld [vmem:[#allocation2 + $0x8] sm:$0xff]
        %v649 = vld [vmem:[#allocation2 + $0x10] sm:$0xff]
        %653 = vrot.lane.b32.xlu0 %v647, 127
        %v654 = vpop.permute.xlu0 %653
        %655 = vrot.lane.b32.xlu0 %v648, 127
        %v656 = vpop.permute.xlu0 %655
        %657 = vrot.lane.b32.xlu0 %v649, 127
        %v658 = vpop.permute.xlu0 %657
        %v659 = vsel %vm351, %v654, %v656
        %v660 = vsel %vm351, %v656, %v658
        %664 = vrot.lane.b32.xlu0 %v647, 126
        %v665 = vpop.permute.xlu0 %664
        %666 = vrot.lane.b32.xlu0 %v648, 126
        %v667 = vpop.permute.xlu0 %666
        %668 = vrot.lane.b32.xlu0 %v649, 126
        %v669 = vpop.permute.xlu0 %668
        %v670 = vsel %vm360, %v665, %v667
        %v671 = vsel %vm360, %v667, %v669
        %675 = vrot.lane.b32.xlu0 %v647, 110
        %v676 = vpop.permute.xlu0 %675
        %677 = vrot.lane.b32.xlu0 %v648, 110
        %v678 = vpop.permute.xlu0 %677
        %679 = vrot.lane.b32.xlu0 %v649, 110
        %v680 = vpop.permute.xlu0 %679
        %v681 = vsel %vm369, %v676, %v678
        %v682 = vsel %vm369, %v678, %v680
        %686 = vrot.lane.b32.xlu0 %v647, 109
        %v687 = vpop.permute.xlu0 %686
        %688 = vrot.lane.b32.xlu0 %v648, 109
        %v689 = vpop.permute.xlu0 %688
        %690 = vrot.lane.b32.xlu0 %v649, 109
        %v691 = vpop.permute.xlu0 %690
        %v692 = vsel %vm378, %v687, %v689
        %v693 = vsel %vm378, %v689, %v691
        %697 = vrot.lane.b32.xlu0 %v647, 108
        %v698 = vpop.permute.xlu0 %697
        %699 = vrot.lane.b32.xlu0 %v648, 108
        %v700 = vpop.permute.xlu0 %699
        %701 = vrot.lane.b32.xlu0 %v649, 108
        %v702 = vpop.permute.xlu0 %701
        %v703 = vsel %vm387, %v698, %v700
        %v704 = vsel %vm387, %v700, %v702
        %708 = vrot.lane.b32.xlu0 %v647, 92
        %v709 = vpop.permute.xlu0 %708
        %710 = vrot.lane.b32.xlu0 %v648, 92
        %v711 = vpop.permute.xlu0 %710
        %712 = vrot.lane.b32.xlu0 %v649, 92
        %v713 = vpop.permute.xlu0 %712
        %v714 = vsel %vm396, %v709, %v711
        %v715 = vsel %vm396, %v711, %v713
        %719 = vrot.lane.b32.xlu0 %v647, 91
        %v720 = vpop.permute.xlu0 %719
        %721 = vrot.lane.b32.xlu0 %v648, 91
        %v722 = vpop.permute.xlu0 %721
        %723 = vrot.lane.b32.xlu0 %v649, 91
        %v724 = vpop.permute.xlu0 %723
        %v725 = vsel %vm405, %v720, %v722
        %v726 = vsel %vm405, %v722, %v724
        %730 = vrot.lane.b32.xlu0 %v647, 90
        %v731 = vpop.permute.xlu0 %730
        %732 = vrot.lane.b32.xlu0 %v648, 90
        %v733 = vpop.permute.xlu0 %732
        %734 = vrot.lane.b32.xlu0 %v649, 90
        %v735 = vpop.permute.xlu0 %734
        %v736 = vsel %vm414, %v731, %v733
        %v737 = vsel %vm414, %v733, %v735
        %v741 = vld [vmem:[%s2] sm:$0xff]
        %v742 = vld [vmem:[%s2 + $0x8] sm:$0xff]
        %v743 = vld [vmem:[%s4] sm:$0xff]
        %v744 = vld [vmem:[%s4 + $0x8] sm:$0xff]
        %746 = vset.pattern.permute.xlu0 1
        %747 = vperm.xlu0 %746, %v743
        %v748 = vpop.permute.xlu0 %747
        %751 = vset.pattern.permute.xlu0 1
        %752 = vperm.xlu0 %751, %v744
        %v753 = vpop.permute.xlu0 %752
        %v757 = vunpack.c.l.b16 %v741
        %v758 = vunpack.c.h.b16 %v741
        %v759 = vunpack.c.l.b16 %v742
        %v760 = vunpack.c.h.b16 %v742
        %v761 = vpack.c.b16 %v759, %v757
        %v762 = vpack.c.b16 %v760, %v758
        %vm764 = vcmask 130048
        %v766 = vsel %vm764, %v762, 0
        %768 = vmatprep.subr.bf16.mxu0 %v648
        %769 = vmatpush1.bf16.msra.mxu0 %v647
        %770 = vmatprep.subr.bf16.mxu0 %v660
        %771 = vmatpush1.bf16.msra.mxu0 %v659
        %772 = vmatprep.subr.bf16.mxu0 %v671
        %773 = vmatpush1.bf16.msra.mxu0 %v670
        %774 = vmatprep.subr.bf16.mxu0 %v682
        %775 = vmatpush1.bf16.msra.mxu0 %v681
        %776 = vmatprep.subr.bf16.mxu0 %v693
        %777 = vmatpush1.bf16.msra.mxu0 %v692
        %778 = vmatprep.subr.bf16.mxu0 %v704
        %779 = vmatpush1.bf16.msra.mxu0 %v703
        %780 = vmatprep.subr.bf16.mxu0 %v715
        %781 = vmatpush1.bf16.msra.mxu0 %v714
        %782 = vmatprep.subr.bf16.mxu0 %v726
        %783 = vmatpush1.bf16.msra.mxu0 %v725
        %784 = vmatprep.subr.bf16.mxu0 %v737
        %785 = vmatpush1.bf16.msra.mxu0 %v736
        %786 = vmatprep.subr.bf16.mxu0 0
        %787 = vmatpush1.bf16.msra.mxu0 0
        %788 = vmatprep.subr.bf16.mxu0 0
        %789 = vmatpush1.bf16.msra.mxu0 0
        %790 = vmatprep.subr.bf16.mxu0 0
        %791 = vmatpush1.bf16.msra.mxu0 0
        %792 = vmatprep.subr.bf16.mxu0 0
        %793 = vmatpush1.bf16.msra.mxu0 0
        %794 = vmatprep.subr.bf16.mxu0 0
        %795 = vmatpush1.bf16.msra.mxu0 0
        %796 = vmatprep.subr.bf16.mxu0 0
        %797 = vmatpush1.bf16.msra.mxu0 0
        %798 = vmatprep.subr.bf16.mxu0 0
        %799 = vmatpush1.bf16.msra.mxu0 0
        %800 = vmatprep.mubr.bf16.mxu0 %v766
        %801 = vmatmul.mubr.bf16.gmra.mrb[0].mxu0 %v761
        %v802 = vpop.f32.mrb[0].mxu0
        %v803 = vadd.f32 %v748, %v802
        %v804 = vpop.f32.mrb[0].mxu0
        %v805 = vadd.f32 %v748, %v804
        %v806 = vpop.f32.mrb[0].mxu0
        %v807 = vadd.f32 %v753, %v806
        %v808 = vpop.f32.mrb[0].mxu0
        %v809 = vadd.f32 %v753, %v808
        %810 = vdwg.mxu0
        %811 = vmatprep.subr.bf16.mxu0 0
        %812 = vmatpush1.bf16.msra.mxu0 %v649
        %813 = vmatprep.subr.bf16.mxu0 0
        %814 = vmatpush1.bf16.msra.mxu0 %v658
        %815 = vmatprep.subr.bf16.mxu0 0
        %816 = vmatpush1.bf16.msra.mxu0 %v669
        %817 = vmatprep.subr.bf16.mxu0 0
        %818 = vmatpush1.bf16.msra.mxu0 %v680
        %819 = vmatprep.subr.bf16.mxu0 0
        %820 = vmatpush1.bf16.msra.mxu0 %v691
        %821 = vmatprep.subr.bf16.mxu0 0
        %822 = vmatpush1.bf16.msra.mxu0 %v702
        %823 = vmatprep.subr.bf16.mxu0 0
        %824 = vmatpush1.bf16.msra.mxu0 %v713
        %825 = vmatprep.subr.bf16.mxu0 0
        %826 = vmatpush1.bf16.msra.mxu0 %v724
        %827 = vmatprep.subr.bf16.mxu0 0
        %828 = vmatpush1.bf16.msra.mxu0 %v735
        %829 = vmatprep.subr.bf16.mxu0 0
        %830 = vmatpush1.bf16.msra.mxu0 0
        %831 = vmatprep.subr.bf16.mxu0 0
        %832 = vmatpush1.bf16.msra.mxu0 0
        %833 = vmatprep.subr.bf16.mxu0 0
        %834 = vmatpush1.bf16.msra.mxu0 0
        %835 = vmatprep.subr.bf16.mxu0 0
        %836 = vmatpush1.bf16.msra.mxu0 0
        %837 = vmatprep.subr.bf16.mxu0 0
        %838 = vmatpush1.bf16.msra.mxu0 0
        %839 = vmatprep.subr.bf16.mxu0 0
        %840 = vmatpush1.bf16.msra.mxu0 0
        %841 = vmatprep.subr.bf16.mxu0 0
        %842 = vmatpush1.bf16.msra.mxu0 0
        %843 = vmatprep.mubr.bf16.mxu0 %v766
        %844 = vmatmul.mubr.bf16.gmra.mrb[0].mxu0 %v761
        %v845 = vpop.f32.mrb[0].mxu0
        %v846 = vadd.f32 %v748, %v845
        %v847 = vpop.f32.mrb[0].mxu0
        %v848 = vpop.f32.mrb[0].mxu0
        %v849 = vadd.f32 %v753, %v848
        %v850 = vpop.f32.mrb[0].mxu0
        %851 = vdwg.mxu0
        %vm852 = vcmp.ge.f32.partialorder %v803, 0.0
        %vm853 = vcmp.ge.f32.partialorder %v805, 0.0
        %vm854 = vcmp.ge.f32.partialorder %v846, 0.0
        %vm855 = vcmp.ge.f32.partialorder %v807, 0.0
        %vm856 = vcmp.ge.f32.partialorder %v809, 0.0
        %vm857 = vcmp.ge.f32.partialorder %v849, 0.0
        %v858 = vld [vmem:[%s5] sm:$0xff]
        %v859 = vld [vmem:[%s5 + $0x8] sm:$0xff]
        %861 = vset.pattern.permute.xlu0 1
        %862 = vperm.xlu0 %861, %v858
        %v863 = vpop.permute.xlu0 %862
        %866 = vset.pattern.permute.xlu0 1
        %867 = vperm.xlu0 %866, %v859
        %v868 = vpop.permute.xlu0 %867
        %v870 = vmul.f32 %v803, %v863
        %v871 = vmul.f32 %v805, %v863
        %v872 = vmul.f32 %v846, %v863
        %v873 = vmul.f32 %v807, %v868
        %v874 = vmul.f32 %v809, %v868
        %v875 = vmul.f32 %v849, %v868
        %v876 = vsel %vm852, %v803, %v870
        %v877 = vsel %vm853, %v805, %v871
        %v878 = vsel %vm854, %v846, %v872
        %v879 = vsel %vm855, %v807, %v873
        %v880 = vsel %vm856, %v809, %v874
        %v881 = vsel %vm857, %v849, %v875
        %v882 = vsel %vm615, %v876, 0.0
        %v883 = vsel %vm616, %v877, 0.0
        %v884 = vsel %vm617, %v878, 0.0
        %v885 = vsel %vm615, %v879, 0.0
        %v886 = vsel %vm616, %v880, 0.0
        %v887 = vsel %vm617, %v881, 0.0
        %v888 = vpack.c.bf16 %v885, %v882
        %v889 = vpack.c.bf16 %v886, %v883
        %v890 = vpack.c.bf16 %v887, %v884
        %894 = vrot.lane.b32.xlu0 %v888, 19
        %v895 = vpop.permute.xlu0 %894
        %896 = vrot.lane.b32.xlu0 %v889, 19
        %v897 = vpop.permute.xlu0 %896
        %898 = vrot.lane.b32.xlu0 %v890, 19
        %v899 = vpop.permute.xlu0 %898
        %v900 = vsel %vm636, %v895, %v897
        %v901 = vsel %vm636, %v897, %v899
        %905 = vst.msk [vmem:[#allocation3] sm:$0xff] %vm642, %v895
        %906 = vst [vmem:[#allocation3 + $0x8] sm:$0xff] %v900
        %907 = vst.msk [vmem:[#allocation3 + $0x10] sm:$0xff] %vm645, %v901
        %v908 = vld [vmem:[#allocation3] sm:$0xff]
        %v909 = vld [vmem:[#allocation3 + $0x8] sm:$0xff]
        %v910 = vld [vmem:[#allocation3 + $0x10] sm:$0xff]
        %914 = vrot.lane.b32.xlu0 %v908, 127
        %v915 = vpop.permute.xlu0 %914
        %916 = vrot.lane.b32.xlu0 %v909, 127
        %v917 = vpop.permute.xlu0 %916
        %918 = vrot.lane.b32.xlu0 %v910, 127
        %v919 = vpop.permute.xlu0 %918
        %v920 = vsel %vm351, %v915, %v917
        %v921 = vsel %vm351, %v917, %v919
        %925 = vrot.lane.b32.xlu0 %v908, 126
        %v926 = vpop.permute.xlu0 %925
        %927 = vrot.lane.b32.xlu0 %v909, 126
        %v928 = vpop.permute.xlu0 %927
        %929 = vrot.lane.b32.xlu0 %v910, 126
        %v930 = vpop.permute.xlu0 %929
        %v931 = vsel %vm360, %v926, %v928
        %v932 = vsel %vm360, %v928, %v930
        %936 = vrot.lane.b32.xlu0 %v908, 110
        %v937 = vpop.permute.xlu0 %936
        %938 = vrot.lane.b32.xlu0 %v909, 110
        %v939 = vpop.permute.xlu0 %938
        %940 = vrot.lane.b32.xlu0 %v910, 110
        %v941 = vpop.permute.xlu0 %940
        %v942 = vsel %vm369, %v937, %v939
        %v943 = vsel %vm369, %v939, %v941
        %947 = vrot.lane.b32.xlu0 %v908, 109
        %v948 = vpop.permute.xlu0 %947
        %949 = vrot.lane.b32.xlu0 %v909, 109
        %v950 = vpop.permute.xlu0 %949
        %951 = vrot.lane.b32.xlu0 %v910, 109
        %v952 = vpop.permute.xlu0 %951
        %v953 = vsel %vm378, %v948, %v950
        %v954 = vsel %vm378, %v950, %v952
        %958 = vrot.lane.b32.xlu0 %v908, 108
        %v959 = vpop.permute.xlu0 %958
        %960 = vrot.lane.b32.xlu0 %v909, 108
        %v961 = vpop.permute.xlu0 %960
        %962 = vrot.lane.b32.xlu0 %v910, 108
        %v963 = vpop.permute.xlu0 %962
        %v964 = vsel %vm387, %v959, %v961
        %v965 = vsel %vm387, %v961, %v963
        %969 = vrot.lane.b32.xlu0 %v908, 92
        %v970 = vpop.permute.xlu0 %969
        %971 = vrot.lane.b32.xlu0 %v909, 92
        %v972 = vpop.permute.xlu0 %971
        %973 = vrot.lane.b32.xlu0 %v910, 92
        %v974 = vpop.permute.xlu0 %973
        %v975 = vsel %vm396, %v970, %v972
        %v976 = vsel %vm396, %v972, %v974
        %980 = vrot.lane.b32.xlu0 %v908, 91
        %v981 = vpop.permute.xlu0 %980
        %982 = vrot.lane.b32.xlu0 %v909, 91
        %v983 = vpop.permute.xlu0 %982
        %984 = vrot.lane.b32.xlu0 %v910, 91
        %v985 = vpop.permute.xlu0 %984
        %v986 = vsel %vm405, %v981, %v983
        %v987 = vsel %vm405, %v983, %v985
        %991 = vrot.lane.b32.xlu0 %v908, 90
        %v992 = vpop.permute.xlu0 %991
        %993 = vrot.lane.b32.xlu0 %v909, 90
        %v994 = vpop.permute.xlu0 %993
        %995 = vrot.lane.b32.xlu0 %v910, 90
        %v996 = vpop.permute.xlu0 %995
        %v997 = vsel %vm414, %v992, %v994
        %v998 = vsel %vm414, %v994, %v996
        %s1002 = scalar_lea.vmem %s2, 16
        %v1003 = vld [vmem:[%s1002] sm:$0xff]
        %v1004 = vld [vmem:[%s1002 + $0x8] sm:$0xff]
        %v1005 = vld [vmem:[%s4] sm:$0xff]
        %v1006 = vld [vmem:[%s4 + $0x8] sm:$0xff]
        %1008 = vset.pattern.permute.xlu0 2
        %1009 = vperm.xlu0 %1008, %v1005
        %v1010 = vpop.permute.xlu0 %1009
        %1013 = vset.pattern.permute.xlu0 2
        %1014 = vperm.xlu0 %1013, %v1006
        %v1015 = vpop.permute.xlu0 %1014
        %v1019 = vunpack.c.l.b16 %v1003
        %v1020 = vunpack.c.h.b16 %v1003
        %v1021 = vunpack.c.l.b16 %v1004
        %v1022 = vunpack.c.h.b16 %v1004
        %v1023 = vpack.c.b16 %v1021, %v1019
        %v1024 = vpack.c.b16 %v1022, %v1020
        %v1027 = vsel %vm764, %v1024, 0
        %1029 = vmatprep.subr.bf16.mxu0 %v909
        %1030 = vmatpush1.bf16.msra.mxu0 %v908
        %1031 = vmatprep.subr.bf16.mxu0 %v921
        %1032 = vmatpush1.bf16.msra.mxu0 %v920
        %1033 = vmatprep.subr.bf16.mxu0 %v932
        %1034 = vmatpush1.bf16.msra.mxu0 %v931
        %1035 = vmatprep.subr.bf16.mxu0 %v943
        %1036 = vmatpush1.bf16.msra.mxu0 %v942
        %1037 = vmatprep.subr.bf16.mxu0 %v954
        %1038 = vmatpush1.bf16.msra.mxu0 %v953
        %1039 = vmatprep.subr.bf16.mxu0 %v965
        %1040 = vmatpush1.bf16.msra.mxu0 %v964
        %1041 = vmatprep.subr.bf16.mxu0 %v976
        %1042 = vmatpush1.bf16.msra.mxu0 %v975
        %1043 = vmatprep.subr.bf16.mxu0 %v987
        %1044 = vmatpush1.bf16.msra.mxu0 %v986
        %1045 = vmatprep.subr.bf16.mxu0 %v998
        %1046 = vmatpush1.bf16.msra.mxu0 %v997
        %1047 = vmatprep.subr.bf16.mxu0 0
        %1048 = vmatpush1.bf16.msra.mxu0 0
        %1049 = vmatprep.subr.bf16.mxu0 0
        %1050 = vmatpush1.bf16.msra.mxu0 0
        %1051 = vmatprep.subr.bf16.mxu0 0
        %1052 = vmatpush1.bf16.msra.mxu0 0
        %1053 = vmatprep.subr.bf16.mxu0 0
        %1054 = vmatpush1.bf16.msra.mxu0 0
        %1055 = vmatprep.subr.bf16.mxu0 0
        %1056 = vmatpush1.bf16.msra.mxu0 0
        %1057 = vmatprep.subr.bf16.mxu0 0
        %1058 = vmatpush1.bf16.msra.mxu0 0
        %1059 = vmatprep.subr.bf16.mxu0 0
        %1060 = vmatpush1.bf16.msra.mxu0 0
        %1061 = vmatprep.mubr.bf16.mxu0 %v1027
        %1062 = vmatmul.mubr.bf16.gmra.mrb[0].mxu0 %v1023
        %v1063 = vpop.f32.mrb[0].mxu0
        %v1064 = vadd.f32 %v1010, %v1063
        %v1065 = vpop.f32.mrb[0].mxu0
        %v1066 = vadd.f32 %v1010, %v1065
        %v1067 = vpop.f32.mrb[0].mxu0
        %v1068 = vadd.f32 %v1015, %v1067
        %v1069 = vpop.f32.mrb[0].mxu0
        %v1070 = vadd.f32 %v1015, %v1069
        %1071 = vdwg.mxu0
        %1072 = vmatprep.subr.bf16.mxu0 0
        %1073 = vmatpush1.bf16.msra.mxu0 %v910
        %1074 = vmatprep.subr.bf16.mxu0 0
        %1075 = vmatpush1.bf16.msra.mxu0 %v919
        %1076 = vmatprep.subr.bf16.mxu0 0
        %1077 = vmatpush1.bf16.msra.mxu0 %v930
        %1078 = vmatprep.subr.bf16.mxu0 0
        %1079 = vmatpush1.bf16.msra.mxu0 %v941
        %1080 = vmatprep.subr.bf16.mxu0 0
        %1081 = vmatpush1.bf16.msra.mxu0 %v952
        %1082 = vmatprep.subr.bf16.mxu0 0
        %1083 = vmatpush1.bf16.msra.mxu0 %v963
        %1084 = vmatprep.subr.bf16.mxu0 0
        %1085 = vmatpush1.bf16.msra.mxu0 %v974
        %1086 = vmatprep.subr.bf16.mxu0 0
        %1087 = vmatpush1.bf16.msra.mxu0 %v985
        %1088 = vmatprep.subr.bf16.mxu0 0
        %1089 = vmatpush1.bf16.msra.mxu0 %v996
        %1090 = vmatprep.subr.bf16.mxu0 0
        %1091 = vmatpush1.bf16.msra.mxu0 0
        %1092 = vmatprep.subr.bf16.mxu0 0
        %1093 = vmatpush1.bf16.msra.mxu0 0
        %1094 = vmatprep.subr.bf16.mxu0 0
        %1095 = vmatpush1.bf16.msra.mxu0 0
        %1096 = vmatprep.subr.bf16.mxu0 0
        %1097 = vmatpush1.bf16.msra.mxu0 0
        %1098 = vmatprep.subr.bf16.mxu0 0
        %1099 = vmatpush1.bf16.msra.mxu0 0
        %1100 = vmatprep.subr.bf16.mxu0 0
        %1101 = vmatpush1.bf16.msra.mxu0 0
        %1102 = vmatprep.subr.bf16.mxu0 0
        %1103 = vmatpush1.bf16.msra.mxu0 0
        %1104 = vmatprep.mubr.bf16.mxu0 %v1027
        %1105 = vmatmul.mubr.bf16.gmra.mrb[0].mxu0 %v1023
        %v1106 = vpop.f32.mrb[0].mxu0
        %v1107 = vadd.f32 %v1010, %v1106
        %v1108 = vpop.f32.mrb[0].mxu0
        %v1109 = vpop.f32.mrb[0].mxu0
        %v1110 = vadd.f32 %v1015, %v1109
        %v1111 = vpop.f32.mrb[0].mxu0
        %1112 = vdwg.mxu0
        %vm1113 = vcmp.ge.f32.partialorder %v1064, 0.0
        %vm1114 = vcmp.ge.f32.partialorder %v1066, 0.0
        %vm1115 = vcmp.ge.f32.partialorder %v1107, 0.0
        %vm1116 = vcmp.ge.f32.partialorder %v1068, 0.0
        %vm1117 = vcmp.ge.f32.partialorder %v1070, 0.0
        %vm1118 = vcmp.ge.f32.partialorder %v1110, 0.0
        %v1119 = vld [vmem:[%s5] sm:$0xff]
        %v1120 = vld [vmem:[%s5 + $0x8] sm:$0xff]
        %1122 = vset.pattern.permute.xlu0 2
        %1123 = vperm.xlu0 %1122, %v1119
        %v1124 = vpop.permute.xlu0 %1123
        %1127 = vset.pattern.permute.xlu0 2
        %1128 = vperm.xlu0 %1127, %v1120
        %v1129 = vpop.permute.xlu0 %1128
        %v1131 = vmul.f32 %v1064, %v1124
        %v1132 = vmul.f32 %v1066, %v1124
        %v1133 = vmul.f32 %v1107, %v1124
        %v1134 = vmul.f32 %v1068, %v1129
        %v1135 = vmul.f32 %v1070, %v1129
        %v1136 = vmul.f32 %v1110, %v1129
        %v1137 = vsel %vm1113, %v1064, %v1131
        %v1138 = vsel %vm1114, %v1066, %v1132
        %v1139 = vsel %vm1115, %v1107, %v1133
        %v1140 = vsel %vm1116, %v1068, %v1134
        %v1141 = vsel %vm1117, %v1070, %v1135
        %v1142 = vsel %vm1118, %v1110, %v1136
        %v1143 = vsel %vm615, %v1137, 0.0
        %v1144 = vsel %vm616, %v1138, 0.0
        %v1145 = vsel %vm617, %v1139, 0.0
        %v1146 = vsel %vm615, %v1140, 0.0
        %v1147 = vsel %vm616, %v1141, 0.0
        %v1148 = vsel %vm617, %v1142, 0.0
        %v1149 = vpack.c.bf16 %v1146, %v1143
        %v1150 = vpack.c.bf16 %v1147, %v1144
        %v1151 = vpack.c.bf16 %v1148, %v1145
        %1155 = vrot.lane.b32.xlu0 %v1149, 19
        %v1156 = vpop.permute.xlu0 %1155
        %1157 = vrot.lane.b32.xlu0 %v1150, 19
        %v1158 = vpop.permute.xlu0 %1157
        %1159 = vrot.lane.b32.xlu0 %v1151, 19
        %v1160 = vpop.permute.xlu0 %1159
        %v1161 = vsel %vm636, %v1156, %v1158
        %v1162 = vsel %vm636, %v1158, %v1160
        %1166 = vst.msk [vmem:[#allocation2] sm:$0xff] %vm642, %v1156
        %1167 = vst [vmem:[#allocation2 + $0x8] sm:$0xff] %v1161
        %1168 = vst.msk [vmem:[#allocation2 + $0x10] sm:$0xff] %vm645, %v1162
        %v1169 = vld [vmem:[#allocation2] sm:$0xff]
        %v1170 = vld [vmem:[#allocation2 + $0x8] sm:$0xff]
        %v1171 = vld [vmem:[#allocation2 + $0x10] sm:$0xff]
        %v1172 = vld [vmem:[%s247] sm:$0xff]
        %v1173 = vld [vmem:[%s247 + $0x8] sm:$0xf]
        %1177 = vrot.lane.b32.xlu0 %v1169, 127
        %v1178 = vpop.permute.xlu0 %1177
        %1179 = vrot.lane.b32.xlu0 %v1170, 127
        %v1180 = vpop.permute.xlu0 %1179
        %1181 = vrot.lane.b32.xlu0 %v1171, 127
        %v1182 = vpop.permute.xlu0 %1181
        %v1183 = vsel %vm351, %v1178, %v1180
        %v1184 = vsel %vm351, %v1180, %v1182
        %1188 = vrot.lane.b32.xlu0 %v1169, 126
        %v1189 = vpop.permute.xlu0 %1188
        %1190 = vrot.lane.b32.xlu0 %v1170, 126
        %v1191 = vpop.permute.xlu0 %1190
        %1192 = vrot.lane.b32.xlu0 %v1171, 126
        %v1193 = vpop.permute.xlu0 %1192
        %v1194 = vsel %vm360, %v1189, %v1191
        %v1195 = vsel %vm360, %v1191, %v1193
        %1199 = vrot.lane.b32.xlu0 %v1169, 110
        %v1200 = vpop.permute.xlu0 %1199
        %1201 = vrot.lane.b32.xlu0 %v1170, 110
        %v1202 = vpop.permute.xlu0 %1201
        %1203 = vrot.lane.b32.xlu0 %v1171, 110
        %v1204 = vpop.permute.xlu0 %1203
        %v1205 = vsel %vm369, %v1200, %v1202
        %v1206 = vsel %vm369, %v1202, %v1204
        %1210 = vrot.lane.b32.xlu0 %v1169, 109
        %v1211 = vpop.permute.xlu0 %1210
        %1212 = vrot.lane.b32.xlu0 %v1170, 109
        %v1213 = vpop.permute.xlu0 %1212
        %1214 = vrot.lane.b32.xlu0 %v1171, 109
        %v1215 = vpop.permute.xlu0 %1214
        %v1216 = vsel %vm378, %v1211, %v1213
        %v1217 = vsel %vm378, %v1213, %v1215
        %1221 = vrot.lane.b32.xlu0 %v1169, 108
        %v1222 = vpop.permute.xlu0 %1221
        %1223 = vrot.lane.b32.xlu0 %v1170, 108
        %v1224 = vpop.permute.xlu0 %1223
        %1225 = vrot.lane.b32.xlu0 %v1171, 108
        %v1226 = vpop.permute.xlu0 %1225
        %v1227 = vsel %vm387, %v1222, %v1224
        %v1228 = vsel %vm387, %v1224, %v1226
        %1232 = vrot.lane.b32.xlu0 %v1169, 92
        %v1233 = vpop.permute.xlu0 %1232
        %1234 = vrot.lane.b32.xlu0 %v1170, 92
        %v1235 = vpop.permute.xlu0 %1234
        %1236 = vrot.lane.b32.xlu0 %v1171, 92
        %v1237 = vpop.permute.xlu0 %1236
        %v1238 = vsel %vm396, %v1233, %v1235
        %v1239 = vsel %vm396, %v1235, %v1237
        %1243 = vrot.lane.b32.xlu0 %v1169, 91
        %v1244 = vpop.permute.xlu0 %1243
        %1245 = vrot.lane.b32.xlu0 %v1170, 91
        %v1246 = vpop.permute.xlu0 %1245
        %1247 = vrot.lane.b32.xlu0 %v1171, 91
        %v1248 = vpop.permute.xlu0 %1247
        %v1249 = vsel %vm405, %v1244, %v1246
        %v1250 = vsel %vm405, %v1246, %v1248
        %1254 = vrot.lane.b32.xlu0 %v1169, 90
        %v1255 = vpop.permute.xlu0 %1254
        %1256 = vrot.lane.b32.xlu0 %v1170, 90
        %v1257 = vpop.permute.xlu0 %1256
        %1258 = vrot.lane.b32.xlu0 %v1171, 90
        %v1259 = vpop.permute.xlu0 %1258
        %v1260 = vsel %vm414, %v1255, %v1257
        %v1261 = vsel %vm414, %v1257, %v1259
        %v1267 = vunpack.c.l.b16 %v1172
        %v1268 = vunpack.c.h.b16 %v1172
        %v1269 = vunpack.c.l.b16 %v1173
        %v1270 = vpack.c.b16 %v1267, %v1267
        %v1271 = vpack.c.b16 %v1268, %v1268
        %v1272 = vpack.c.b16 %v1269, %v1269
        %1273 = vrot.lane.b32.xlu0 %v1270, 109
        %v1274 = vpop.permute.xlu0 %1273
        %1275 = vrot.lane.b32.xlu0 %v1271, 109
        %v1276 = vpop.permute.xlu0 %1275
        %1277 = vrot.lane.b32.xlu0 %v1272, 109
        %v1278 = vpop.permute.xlu0 %1277
        %v1279 = vsel %vm378, %v1274, %v1276
        %v1280 = vsel %vm378, %v1276, %v1278
        %v1281 = vld [vmem:[%s3] sm:$0xff]
        %v1282 = vld [vmem:[%s3 + $0x8] sm:$0x33]
        %v1283 = vld [vmem:[%s4] sm:$0xff]
        %v1284 = vld [vmem:[%s4 + $0x8] sm:$0xf]
        %1286 = vset.pattern.permute.xlu0 3
        %1287 = vperm.xlu0 %1286, %v1283
        %v1288 = vpop.permute.xlu0 %1287
        %1291 = vset.pattern.permute.xlu0 3
        %1292 = vperm.xlu0 %1291, %v1284
        %v1293 = vpop.permute.xlu0 %1292
        %v1297 = vunpack.c.l.b16 %v1281
        %v1298 = vunpack.c.h.b16 %v1281
        %v1299 = vunpack.c.l.b16 %v1282
        %v1300 = vunpack.c.h.b16 %v1282
        %v1301 = vpack.c.b16 %v1299, %v1297
        %v1302 = vpack.c.b16 %v1300, %v1298
        %vm1304 = vcmask 195584
        %v1306 = vsel %vm1304, %v1302, 0
        %v1309 = vsel %vm417, %v1279, 0
        %v1312 = vsel %vm417, %v1280, 0
        %v1315 = vsel %vm417, %v1278, 0
        %1317 = vmatprep.subr.bf16.mxu0 %v1170
        %1318 = vmatpush1.bf16.msra.mxu0 %v1169
        %1319 = vmatprep.subr.bf16.mxu0 %v1184
        %1320 = vmatpush1.bf16.msra.mxu0 %v1183
        %1321 = vmatprep.subr.bf16.mxu0 %v1195
        %1322 = vmatpush1.bf16.msra.mxu0 %v1194
        %1323 = vmatprep.subr.bf16.mxu0 %v1206
        %1324 = vmatpush1.bf16.msra.mxu0 %v1205
        %1325 = vmatprep.subr.bf16.mxu0 %v1217
        %1326 = vmatpush1.bf16.msra.mxu0 %v1216
        %1327 = vmatprep.subr.bf16.mxu0 %v1228
        %1328 = vmatpush1.bf16.msra.mxu0 %v1227
        %1329 = vmatprep.subr.bf16.mxu0 %v1239
        %1330 = vmatpush1.bf16.msra.mxu0 %v1238
        %1331 = vmatprep.subr.bf16.mxu0 %v1250
        %1332 = vmatpush1.bf16.msra.mxu0 %v1249
        %1333 = vmatprep.subr.bf16.mxu0 %v1261
        %1334 = vmatpush1.bf16.msra.mxu0 %v1260
        %1335 = vmatprep.subr.bf16.mxu0 %v1312
        %1336 = vmatpush1.bf16.msra.mxu0 %v1309
        %1337 = vmatprep.subr.bf16.mxu0 0
        %1338 = vmatpush1.bf16.msra.mxu0 0
        %1339 = vmatprep.subr.bf16.mxu0 0
        %1340 = vmatpush1.bf16.msra.mxu0 0
        %1341 = vmatprep.subr.bf16.mxu0 0
        %1342 = vmatpush1.bf16.msra.mxu0 0
        %1343 = vmatprep.subr.bf16.mxu0 0
        %1344 = vmatpush1.bf16.msra.mxu0 0
        %1345 = vmatprep.subr.bf16.mxu0 0
        %1346 = vmatpush1.bf16.msra.mxu0 0
        %1347 = vmatprep.subr.bf16.mxu0 0
        %1348 = vmatpush1.bf16.msra.mxu0 0
        %1349 = vmatprep.mubr.bf16.mxu0 %v1306
        %1350 = vmatmul.mubr.bf16.gmra.mrb[0].mxu0 %v1301
        %v1351 = vpop.f32.mrb[0].mxu0
        %v1352 = vadd.f32 %v1288, %v1351
        %v1353 = vpop.f32.mrb[0].mxu0
        %v1354 = vadd.f32 %v1288, %v1353
        %v1355 = vpop.f32.mrb[0].mxu0
        %v1356 = vadd.f32 %v1293, %v1355
        %v1357 = vpop.f32.mrb[0].mxu0
        %v1358 = vadd.f32 %v1293, %v1357
        %1359 = vdwg.mxu0
        %1360 = vmatprep.subr.bf16.mxu0 0
        %1361 = vmatpush1.bf16.msra.mxu0 %v1171
        %1362 = vmatprep.subr.bf16.mxu0 0
        %1363 = vmatpush1.bf16.msra.mxu0 %v1182
        %1364 = vmatprep.subr.bf16.mxu0 0
        %1365 = vmatpush1.bf16.msra.mxu0 %v1193
        %1366 = vmatprep.subr.bf16.mxu0 0
        %1367 = vmatpush1.bf16.msra.mxu0 %v1204
        %1368 = vmatprep.subr.bf16.mxu0 0
        %1369 = vmatpush1.bf16.msra.mxu0 %v1215
        %1370 = vmatprep.subr.bf16.mxu0 0
        %1371 = vmatpush1.bf16.msra.mxu0 %v1226
        %1372 = vmatprep.subr.bf16.mxu0 0
        %1373 = vmatpush1.bf16.msra.mxu0 %v1237
        %1374 = vmatprep.subr.bf16.mxu0 0
        %1375 = vmatpush1.bf16.msra.mxu0 %v1248
        %1376 = vmatprep.subr.bf16.mxu0 0
        %1377 = vmatpush1.bf16.msra.mxu0 %v1259
        %1378 = vmatprep.subr.bf16.mxu0 0
        %1379 = vmatpush1.bf16.msra.mxu0 %v1315
        %1380 = vmatprep.subr.bf16.mxu0 0
        %1381 = vmatpush1.bf16.msra.mxu0 0
        %1382 = vmatprep.subr.bf16.mxu0 0
        %1383 = vmatpush1.bf16.msra.mxu0 0
        %1384 = vmatprep.subr.bf16.mxu0 0
        %1385 = vmatpush1.bf16.msra.mxu0 0
        %1386 = vmatprep.subr.bf16.mxu0 0
        %1387 = vmatpush1.bf16.msra.mxu0 0
        %1388 = vmatprep.subr.bf16.mxu0 0
        %1389 = vmatpush1.bf16.msra.mxu0 0
        %1390 = vmatprep.subr.bf16.mxu0 0
        %1391 = vmatpush1.bf16.msra.mxu0 0
        %1392 = vmatprep.mubr.bf16.mxu0 %v1306
        %1393 = vmatmul.mubr.bf16.gmra.mrb[0].mxu0 %v1301
        %v1394 = vpop.f32.mrb[0].mxu0
        %v1395 = vadd.f32 %v1288, %v1394
        %v1396 = vpop.f32.mrb[0].mxu0
        %v1397 = vpop.f32.mrb[0].mxu0
        %v1398 = vadd.f32 %v1293, %v1397
        %v1399 = vpop.f32.mrb[0].mxu0
        %1400 = vdwg.mxu0
        %1401 = vst [vmem:[%s284] sm:$0xff] %v1352
        %1402 = vst [vmem:[%s284 + $0x8] sm:$0xff] %v1354
        %vm1403 = vcmask 261120
        %1404 = vst.msk [vmem:[%s284 + $0x10] sm:$0xff] %vm1403, %v1395
        %1405 = vst [vmem:[%s284 + $0x18] sm:$0xf] %v1356
        %1406 = vst [vmem:[%s284 + $0x20] sm:$0xf] %v1358
        %vm1407 = vcmask 257024
        %1408 = vst.msk [vmem:[%s284 + $0x28] sm:$0xf] %vm1407, %v1398
        %p1409 = scmp.lt.s32.totalorder %s21, 1
        %s1410 = scalar_select %p1409, %s21, 1
        %s1411 = smul.addr %s1410, 6
        %s1412 = smul.addr %s1411, 8
        %s1413 = scalar_lea.vmem %s6, %s1412
        // Predicated region
        $region53: #{tpu_custom_call.1} parent=43 // pred_check
          %p1414 = pneg %p170
        $region54: #{tpu_custom_call.1} parent=43 // pred_check_branch
          %1416 = sbr.rel (%p1414) target = $region56
        $region55: #{tpu_custom_call.1} parent=43 // pred_region
          _
        $region56: #{tpu_custom_call.1} parent=43 // pred_fallthru
          _
      $region44: #{tpu_custom_call.1} parent=5 // pred_fallthru
        _
      %p1417 = scmp.le.s32.totalorder 2, %s16
      // Predicated region
      $region57: #{tpu_custom_call.1} parent=5 // pred_check
        %p1418 = pneg %p1417
      $region58: #{tpu_custom_call.1} parent=5 // pred_check_branch
        %1420 = sbr.rel (%p1418) target = $region60
      $region59: #{tpu_custom_call.1} parent=5 // pred_region
        %s1421 = ssub.s32 %s16, 2
        // Predicated region
        $region61: #{tpu_custom_call.1} parent=59 // pred_check
          %p1422 = pneg %p176
        $region62: #{tpu_custom_call.1} parent=59 // pred_check_branch
          %1424 = sbr.rel (%p1422) target = $region64
        $region63: #{tpu_custom_call.1} parent=59 // pred_region
          %p1425 = scmp.lt.s32.totalorder %s22, 1
          %s1426 = scalar_select %p1425, %s22, 1
          %s1427 = smul.addr %s1426, 6
          %s1428 = smul.addr %s1427, 8
          %s1429 = scalar_lea.vmem %s6, %s1428
        $region64: #{tpu_custom_call.1} parent=59 // pred_fallthru
          _
      $region60: #{tpu_custom_call.1} parent=5 // pred_fallthru
        _
    $region6: #{tpu_custom_call.1} parent=1 // loop_footer
      %s20 = sadd.s32 1, %s16
    $region7: #{tpu_custom_call.1} parent=1 // loop_footer_branch
      %15 = sbr.rel target = $region3
    $region8: #{tpu_custom_call.1} parent=1 // loop_exit
      _
    %1430 = vsyncpa [#allocation5], 1
    %s1431 = scalar_lea.sflag [#allocation5], 1
    %1432 = vsyncpa %s1431, 1
    %1433 = vsyncpa [#allocation7], 1

</llo_original>
